<compile_context>
chip_gen: v6e
topology: v6e:2x2x1
jax: 0.10.0
libtpu: 0.0.40
codegen_flags: <defaults>
</compile_context>

<pallas_src>
import functools
import math

import jax
import jax.numpy as jnp
from jax.experimental import pallas as pl
from jax.experimental.pallas import tpu as pltpu

EPS = 1e-5
ACT_DTYPE = jnp.bfloat16            # backbone activations / weights


def _vmem_limit_bytes():
    # v5e/v6e: 128 MiB physical VMEM -> use ~100 MiB; v7x: 64 MiB -> 48 MiB.
    try:
        cap = pltpu.get_tpu_info().vmem_capacity_bytes
    except Exception:
        cap = 64 * 1024 * 1024
    if cap >= 96 * 1024 * 1024:
        return 100 * 1024 * 1024
    return 48 * 1024 * 1024


VMEM_LIMIT = _vmem_limit_bytes()


def _cparams(sem):
    return pltpu.CompilerParams(dimension_semantics=sem,
                                vmem_limit_bytes=VMEM_LIMIT)


# --------------------------- Pallas kernels ---------------------------------

def _mm_kernel(x_ref, w_ref, shift_ref, o_ref, *, relu):
    """(TM,C)@(C,TN) matmul with folded BN shift; full-K reduction per block."""
    y = jnp.dot(x_ref[...], w_ref[...], preferred_element_type=jnp.float32)
    y = y + shift_ref[...]
    if relu:
        y = jnp.maximum(y, 0.0)
    o_ref[...] = y.astype(o_ref.dtype)


def _mm_res_kernel(x_ref, w_ref, shift_ref, res_ref, o_ref, *, relu):
    """Same as _mm_kernel but fuses the bottleneck residual add before ReLU."""
    y = jnp.dot(x_ref[...], w_ref[...], preferred_element_type=jnp.float32)
    y = y + shift_ref[...] + res_ref[...].astype(jnp.float32)
    if relu:
        y = jnp.maximum(y, 0.0)
    o_ref[...] = y.astype(o_ref.dtype)


def _spatial_conv_kernel(x_ref, w_ref, shift_ref, o_ref, *, taps, m_over,
                         chunk, relu):
    """KxK conv for one (image, Cout-tile): K*K shifted-row-slice matmuls.

    x_ref:     (P, Mq, Cin)     phase-decomposed, flattened, padded activation
    w_ref:     (K*K, Cin, TCO)  conv weights (BN scale folded) for this tile
    shift_ref: (1, TCO)         folded BN shift
    o_ref:     (1, M_over, TCO) output rows (garbage columns trimmed outside)

    Taps are accumulated per ~chunk-row slab in a local f32 value (kept
    vreg/VMEM-resident, one store per slab) rather than via full-size scratch
    read-modify-writes per tap.
    """
    shift = shift_ref[...]
    for c0 in range(0, m_over, chunk):
        sz = min(chunk, m_over - c0)
        pi0, off0 = taps[0]
        acc = jnp.dot(x_ref[pi0, off0 + c0:off0 + c0 + sz, :], w_ref[0],
                      preferred_element_type=jnp.float32)
        for t in range(1, len(taps)):
            pi, off = taps[t]
            acc = acc + jnp.dot(x_ref[pi, off + c0:off + c0 + sz, :], w_ref[t],
                                preferred_element_type=jnp.float32)
        y = acc + shift
        if relu:
            y = jnp.maximum(y, 0.0)
        o_ref[0, c0:c0 + sz, :] = y.astype(o_ref.dtype)


def _maxpool_kernel(x_ref, o_ref, *, taps, m_over):
    """3x3/stride-2 max-pool: 9-tap max over shifted row-slices, all in VMEM."""
    pi0, off0 = taps[0]
    m = x_ref[pi0, off0:off0 + m_over, :]
    for pi, off in taps[1:]:
        m = jnp.maximum(m, x_ref[pi, off:off + m_over, :])
    o_ref[0] = m


def _head_kernel(x_ref, scale_ref, shift_ref, wcls_ref,
                 feat_ref, bn_ref, cls_ref, *, inv_s):
    """GAP (spatial-axis sum) + BatchNorm1d (eval) + lane-dense classifier."""
    xs = jnp.sum(x_ref[...].astype(jnp.float32), axis=1)       # (N, C)
    feats = xs * inv_s
    bn = feats * scale_ref[...] + shift_ref[...]
    cls = jnp.dot(bn.astype(wcls_ref.dtype), wcls_ref[...],
                  preferred_element_type=jnp.float32)
    feat_ref[...] = feats
    bn_ref[...] = bn
    cls_ref[...] = cls


# --------------------------- plain-JAX glue ----------------------------------

def _phase_flatten(x, k, s, pad, pad_value):
    """Pad, stride-phase decompose and spatially flatten an NHWC activation so
    every (dy, dx) tap of a KxK/stride-s conv/pool is a contiguous row-slice of
    one phase plane.  The activation is materialized in HBM exactly once (no
    k*k im2col expansion)."""
    N, H, W, C = x.shape
    Hp, Wp = H + 2 * pad, W + 2 * pad
    Ho = (Hp - k) // s + 1
    Wo = (Wp - k) // s + 1
    q = (k - 1) // s
    Hq = max(-(-Hp // s), Ho + q + 1)      # +1 row of slack keeps taps in-bounds
    Wq = max(-(-Wp // s), Wo + q)
    xp = jnp.pad(x,
                 ((0, 0), (pad, s * Hq - H - pad), (pad, s * Wq - W - pad), (0, 0)),
                 constant_values=pad_value)
    ph = xp.reshape(N, Hq, s, Wq, s, C).transpose(0, 2, 4, 1, 3, 5)
    phflat = ph.reshape(N * s * s, Hq * Wq, C)
    taps = tuple(((dy % s) * s + (dx % s), (dy // s) * Wq + (dx // s))
                 for dy in range(k) for dx in range(k))
    return phflat, taps, Ho, Wo, Wq


def _pick_tm(M):
    if M <= 1024:
        return M
    for t in (1024, 512, 256, 128, 64, 32, 16, 8):
        if M % t == 0:
            return t
    return 0


def _pick_tn(cout):
    if cout % 256 == 0:
        return 256                           # full 256-wide MXU on v6e/v7x
    if cout % 128 == 0:
        return 128
    return cout


# --------------------------- layer wrappers ----------------------------------

def matmul_bn(x2, w, shift, *, relu, residual=None):
    """(M,K)@(K,Cout) + folded BN shift (+ residual) (+ ReLU), full-K blocks."""
    M, K = x2.shape
    Cout = w.shape[-1]

    tm = _pick_tm(M)
    pad_m = 0
    if tm == 0:                               # ragged-M fallback (never hit here)
        tm = 256
        pad_m = (-M) % tm
        x2 = jnp.pad(x2, ((0, pad_m), (0, 0)))
        if residual is not None:
            residual = jnp.pad(residual, ((0, pad_m), (0, 0)))
    Mp = M + pad_m
    tn = _pick_tn(Cout)
    grid = (Mp // tm, Cout // tn)

    x_spec = pl.BlockSpec((tm, K), lambda i, j: (i, 0))
    w_spec = pl.BlockSpec((K, tn), lambda i, j: (0, j))
    s_spec = pl.BlockSpec((1, tn), lambda i, j: (0, j))
    o_spec = pl.BlockSpec((tm, tn), lambda i, j: (i, j))

    n_res = 2 if residual is not None else 1
    cost = pl.CostEstimate(
        flops=2 * Mp * K * Cout, transcendentals=0,
        bytes_accessed=(Mp * K + K * Cout + n_res * Mp * Cout) * 2)

    if residual is None:
        kernel = functools.partial(_mm_kernel, relu=relu)
        in_specs = [x_spec, w_spec, s_spec]
        operands = (x2, w, shift)
    else:
        kernel = functools.partial(_mm_res_kernel, relu=relu)
        r_spec = pl.BlockSpec((tm, tn), lambda i, j: (i, j))
        in_specs = [x_spec, w_spec, s_spec, r_spec]
        operands = (x2, w, shift, residual)

    out = pl.pallas_call(
        kernel,
        grid=grid,
        in_specs=in_specs,
        out_specs=o_spec,
        out_shape=jax.ShapeDtypeStruct((Mp, Cout), ACT_DTYPE),
        compiler_params=_cparams(("parallel", "parallel")),
        cost_estimate=cost,
    )(*operands)
    if pad_m:
        out = out[:M]
    return out


def conv1x1_bn(x, cp, *, relu, residual=None, stride=1):
    """1x1 Conv2d(bias=False) + folded BatchNorm2d (+ residual) (+ ReLU)."""
    if stride > 1:
        # TODO(synk): fold the stride-2 subsampling into the DMA (BlockSpec /
        #             in-kernel subsample) instead of this plain-JAX slice copy.
        x = x[:, ::stride, ::stride, :]
    N, H, W, C = x.shape
    Cout = cp['w'].shape[-1]
    M = N * H * W
    res2 = residual.reshape(M, Cout) if residual is not None else None
    out = matmul_bn(x.reshape(M, C), cp['w'], cp['shift'], relu=relu,
                    residual=res2)
    return out.reshape(N, H, W, Cout)


def conv1_7x7_bn(x, cp):
    """ResNet conv1 (7x7 / stride-2 / pad-3, Cin=3) + folded BN, as ONE K=147
    matmul: one-time im2col (conv1 only) packs 49 taps x 3 channels onto the
    MXU contraction axis instead of 49 K=3 matmuls."""
    N, H, W, C = x.shape
    k, s, pad = 7, 2, 3
    Ho = (H + 2 * pad - k) // s + 1
    Wo = (W + 2 * pad - k) // s + 1
    xp = jnp.pad(x, ((0, 0), (pad, pad), (pad, pad), (0, 0)))
    cols = [xp[:, dy:dy + s * Ho:s, dx:dx + s * Wo:s, :]
            for dy in range(k) for dx in range(k)]
    xcol = jnp.concatenate(cols, axis=-1).reshape(N * Ho * Wo, k * k * C)
    out = matmul_bn(xcol, cp['w'], cp['shift'], relu=False)
    return out.reshape(N, Ho, Wo, -1)


def conv_spatial_bn(x, cp, *, k, stride, pad, relu):
    """KxK Conv2d(bias=False) + folded BatchNorm2d (+ ReLU), no im2col in HBM."""
    N, H, W, C = x.shape
    w = cp['w']                              # (k*k, C, Cout) bf16, scale folded
    Cout = w.shape[-1]
    phflat, taps, Ho, Wo, Wq = _phase_flatten(x, k, stride, pad, 0.0)
    P = stride * stride
    Mq = phflat.shape[1]
    m_over = Ho * Wq                         # over-computed cols trimmed below
    tco = _pick_tn(Cout)
    n_co = Cout // tco
    kk = k * k
    # keep the per-chunk f32 accumulator ~<=128 KiB so it stays vreg-friendly
    chunk = min(m_over, max(8, (32768 // tco) // 8 * 8))

    cost = pl.CostEstimate(
        flops=2 * N * m_over * kk * C * Cout, transcendentals=0,
        bytes_accessed=(phflat.size + w.size + N * m_over * Cout) * 2)

    out = pl.pallas_call(
        functools.partial(_spatial_conv_kernel, taps=taps, m_over=m_over,
                          chunk=chunk, relu=relu),
        grid=(N, n_co),
        in_specs=[
            pl.BlockSpec((P, Mq, C), lambda b, co: (b, 0, 0)),
            pl.BlockSpec((kk, C, tco), lambda b, co: (0, 0, co)),
            pl.BlockSpec((1, tco), lambda b, co: (0, co)),
        ],
        out_specs=pl.BlockSpec((1, m_over, tco), lambda b, co: (b, 0, co)),
        out_shape=jax.ShapeDtypeStruct((N, m_over, Cout), ACT_DTYPE),
        compiler_params=_cparams(("parallel", "parallel")),
        cost_estimate=cost,
    )(phflat, w, cp['shift'])
    # TODO(synk): store compact (Ho, Wo) blocks directly from the kernel (and
    #             skip the stride-1 pad copy) instead of this HBM trim slice.
    return out.reshape(N, Ho, Wq, Cout)[:, :, :Wo, :]


def maxpool3x3s2(x):
    """MaxPool2d(kernel_size=3, stride=2, padding=1), window max in VMEM."""
    N, H, W, C = x.shape
    phflat, taps, Ho, Wo, Wq = _phase_flatten(x, 3, 2, 1, -jnp.inf)
    Mq = phflat.shape[1]
    m_over = Ho * Wq
    tc = min(C, 128)
    n_c = C // tc
    out = pl.pallas_call(
        functools.partial(_maxpool_kernel, taps=taps, m_over=m_over),
        grid=(N, n_c),
        in_specs=[pl.BlockSpec((4, Mq, tc), lambda b, c: (b, 0, c))],
        out_specs=pl.BlockSpec((1, m_over, tc), lambda b, c: (b, 0, c)),
        out_shape=jax.ShapeDtypeStruct((N, m_over, C), x.dtype),
        compiler_params=_cparams(("parallel", "parallel")),
    )(phflat)
    return out.reshape(N, Ho, Wq, C)[:, :, :Wo, :]


def bottleneck_forward(x, p):
    """torchvision Bottleneck: 1x1 -> 3x3(stride) -> 1x1, residual, ReLU."""
    s = p['stride']
    out = conv1x1_bn(x, p['c1'], relu=True)
    out = conv_spatial_bn(out, p['c2'], k=3, stride=s, pad=1, relu=True)
    if 'ds' in p:
        identity = conv1x1_bn(x, p['ds'], relu=False, stride=s)
    else:
        identity = x
    # TODO(synk): c1 -> c2 could additionally be fused via a nested
    #             pltpu.emit_pipeline to save one HBM round-trip per block.
    out = conv1x1_bn(out, p['c3'], relu=True, residual=identity)
    return out


def head_forward(x, params, class_num):
    """GAP + squeeze + BatchNorm1d(eval) + Linear(2048, class_num, bias=False)."""
    N, Hf, Wf, C = x.shape
    S = Hf * Wf
    x_head = x.reshape(N, S, C)              # free reshape, no HBM relayout
    wcls = params['wcls_padded']             # (C, CP) bf16, CP % 128 == 0
    CP = wcls.shape[1]
    feats, bn, cls_p = pl.pallas_call(
        functools.partial(_head_kernel, inv_s=1.0 / S),
        out_shape=(jax.ShapeDtypeStruct((N, C), jnp.float32),
                   jax.ShapeDtypeStruct((N, C), jnp.float32),
                   jax.ShapeDtypeStruct((N, CP), jnp.float32)),
        compiler_params=pltpu.CompilerParams(vmem_limit_bytes=VMEM_LIMIT),
    )(x_head, params['bneck_scale'], params['bneck_shift'], wcls)
    return feats, bn, cls_p[:, :class_num]


# --------------------------- parameter construction --------------------------

class ParamGen:
    def __init__(self, seed):
        self.key = jax.random.PRNGKey(seed)

    def next(self):
        self.key, sub = jax.random.split(self.key)
        return sub


def _bn_fold():
    # folded eval-mode BatchNorm: gamma=1, beta=0, running_mean=0, running_var=1
    scale = 1.0 / math.sqrt(1.0 + EPS)
    shift = 0.0
    return scale, shift


def conv1x1_param(pg, cin, cout):
    std = math.sqrt(2.0 / cin)
    w = jax.random.normal(pg.next(), (cin, cout), jnp.float32) * std
    scale, shift = _bn_fold()
    return {'w': (w * scale).astype(ACT_DTYPE),
            'shift': jnp.full((1, cout), shift, jnp.float32)}


def conv_spatial_param(pg, cin, cout, k):
    std = math.sqrt(2.0 / (cin * k * k))
    # rows ordered (dy, dx) to match the tap enumeration in _phase_flatten.
    w = jax.random.normal(pg.next(), (k * k, cin, cout), jnp.float32) * std
    scale, shift = _bn_fold()
    return {'w': (w * scale).astype(ACT_DTYPE),
            'shift': jnp.full((1, cout), shift, jnp.float32)}


def conv1_param(pg):
    """conv1 weight flattened to (49*3, 64); row order (dy, dx, cin) matches
    the im2col channel-concat order in conv1_7x7_bn."""
    cin, cout, k = 3, 64, 7
    std = math.sqrt(2.0 / (cin * k * k))
    w = jax.random.normal(pg.next(), (k * k, cin, cout), jnp.float32) * std
    scale, shift = _bn_fold()
    return {'w': (w * scale).reshape(k * k * cin, cout).astype(ACT_DTYPE),
            'shift': jnp.full((1, cout), shift, jnp.float32)}


def bottleneck_param(pg, cin, mid, stride, downsample):
    p = {'c1': conv1x1_param(pg, cin, mid),
         'c2': conv_spatial_param(pg, mid, mid, 3),
         'c3': conv1x1_param(pg, mid, mid * 4),
         'stride': stride}
    if downsample:
        p['ds'] = conv1x1_param(pg, cin, mid * 4)
    return p


def make_layer(pg, cin, mid, blocks, stride):
    params = [bottleneck_param(pg, cin, mid, stride, downsample=True)]
    for _ in range(blocks - 1):
        params.append(bottleneck_param(pg, mid * 4, mid, 1, downsample=False))
    return params


def make_model_params(pg, class_num):
    params = {}
    params['conv1'] = conv1_param(pg)
    params['layer1'] = make_layer(pg, 64, 64, 3, 1)
    params['layer2'] = make_layer(pg, 256, 128, 4, 2)
    params['layer3'] = make_layer(pg, 512, 256, 6, 2)
    # ReID mod: layer4[0].conv2.stride=(1,1), downsample stride=(1,1) -> stride 1
    params['layer4'] = make_layer(pg, 1024, 512, 3, 1)
    # self.bottleneck = BatchNorm1d(2048): kaiming init -> weight=1, bias=0
    # (bias frozen), running stats default (mean=0, var=1)  [eval mode]
    scale, shift = _bn_fold()
    params['bneck_scale'] = jnp.full((1, 2048), scale, jnp.float32)
    params['bneck_shift'] = jnp.full((1, 2048), shift, jnp.float32)
    # self.classifier = Linear(2048, class_num, bias=False), weight ~ N(0, 0.001);
    # zero-pad columns to a multiple of 128 lanes (lane-dense store), bf16.
    cp_width = ((class_num + 127) // 128) * 128
    wcls = jax.random.normal(pg.next(), (2048, class_num), jnp.float32) * 0.001
    params['wcls_padded'] = jnp.pad(
        wcls, ((0, 0), (0, cp_width - class_num))).astype(ACT_DTYPE)
    return params


# --------------------------- full forward ------------------------------------

def model_v2_forward(x_nchw, params, class_num):
    """Returns (features, bn, cls_score); eval-mode module output is `bn`."""
    x = jnp.transpose(x_nchw, (0, 2, 3, 1)).astype(ACT_DTYPE)   # NCHW -> NHWC
    # NOTE: ModelV2's Sequential is (conv1, bn1, maxpool, ...) -- resnet.relu is
    # omitted, so there is no ReLU between bn1 and the max-pool.
    x = conv1_7x7_bn(x, params['conv1'])
    x = maxpool3x3s2(x)
    for layer in ('layer1', 'layer2', 'layer3', 'layer4'):
        for blk in params[layer]:
            x = bottleneck_forward(x, blk)
    return head_forward(x, params, class_num)


# --------------------------- demo --------------------------------------------

if __name__ == "__main__":
    class_num = 10
    # Small input consistent with the module: NCHW image batch (>=32 spatial
    # so the /32 ResNet50 reduction keeps a nonzero feature map).
    x = jax.random.normal(jax.random.PRNGKey(0), (2, 3, 64, 64), jnp.float32)
    params = make_model_params(ParamGen(42), class_num)

    feats, bn, cls = model_v2_forward(x, params, class_num)
    jax.block_until_ready((feats, bn, cls))

    assert feats.shape == (2, 2048)
    assert bn.shape == (2, 2048)       # eval-mode module output
    assert cls.shape == (2, class_num)
    print("KERNEL_OK")
</pallas_src>

<mosaic_0001>
module attributes {stable_mosaic.version = 11 : i64} {
  func.func @_mm_kernel(%arg0: i32, %arg1: i32, %arg2: memref<1024x147xbf16, #tpu.memory_space<vmem>>, %arg3: memref<147x64xbf16, #tpu.memory_space<vmem>>, %arg4: memref<1x64xf32, #tpu.memory_space<vmem>>, %arg5: memref<1024x64xbf16, #tpu.memory_space<vmem>>) attributes {dimension_semantics = [#tpu.dimension_semantics<parallel>, #tpu.dimension_semantics<parallel>], iteration_bounds = array<i64: 2, 1>, scalar_prefetch = 0 : i64, scratch_operands = 0 : i64, tpu.core_type = #tpu.core_type<tc>, window_params = [{transform_indices = @transform_0, window_bounds = array<i64: 1024, 147>}, {transform_indices = @transform_1, window_bounds = array<i64: 147, 64>}, {transform_indices = @transform_2, window_bounds = array<i64: 1, 64>}, {transform_indices = @transform_3, window_bounds = array<i64: 1024, 64>}]} {
    %c0 = arith.constant 0 : index
    %c0_0 = arith.constant 0 : index
    %0 = vector.load %arg2[%c0, %c0_0] : memref<1024x147xbf16, #tpu.memory_space<vmem>>, vector<1024x147xbf16>
    %c0_1 = arith.constant 0 : index
    %c0_2 = arith.constant 0 : index
    %1 = vector.load %arg3[%c0_1, %c0_2] : memref<147x64xbf16, #tpu.memory_space<vmem>>, vector<147x64xbf16>
    %cst = arith.constant dense<0.000000e+00> : vector<1024x64xf32>
    %2 = tpu.matmul %0, %1, %cst {dimension_numbers = #tpu.dot_dimension_numbers<[1], [0], [0], [1], [0, 0, 1, 1], [], []>} : vector<1024x147xbf16>, vector<147x64xbf16>, vector<1024x64xf32> -> vector<1024x64xf32>
    %c0_3 = arith.constant 0 : index
    %c0_4 = arith.constant 0 : index
    %3 = vector.load %arg4[%c0_3, %c0_4] : memref<1x64xf32, #tpu.memory_space<vmem>>, vector<1x64xf32>
    %4 = vector.broadcast %3 : vector<1x64xf32> to vector<1024x64xf32>
    %5 = arith.addf %2, %4 : vector<1024x64xf32>
    %6 = arith.truncf %5 : vector<1024x64xf32> to vector<1024x64xbf16>
    %c0_5 = arith.constant 0 : index
    %c0_6 = arith.constant 0 : index
    %7 = vector.load %arg5[%c0_5, %c0_6] : memref<1024x64xbf16, #tpu.memory_space<vmem>>, vector<1024x64xbf16>
    tpu.vector_store %arg5[%c0_5, %c0_6], %6 {strides = array<i32>} : memref<1024x64xbf16, #tpu.memory_space<vmem>>, vector<1024x64xbf16>,
    return
  }
  func.func @transform_0(%arg0: i32, %arg1: i32) -> (i32, i32) {
    %c0_i32 = arith.constant 0 : i32
    %c0_i32_0 = arith.constant 0 : i32
    return %arg0, %c0_i32 : i32, i32
  }
  func.func @transform_1(%arg0: i32, %arg1: i32) -> (i32, i32) {
    %c0_i32 = arith.constant 0 : i32
    %c0_i32_0 = arith.constant 0 : i32
    return %c0_i32, %arg1 : i32, i32
  }
  func.func @transform_2(%arg0: i32, %arg1: i32) -> (i32, i32) {
    %c0_i32 = arith.constant 0 : i32
    %c0_i32_0 = arith.constant 0 : i32
    return %c0_i32, %arg1 : i32, i32
  }
  func.func @transform_3(%arg0: i32, %arg1: i32) -> (i32, i32) {
    %c0_i32 = arith.constant 0 : i32
    return %arg0, %arg1 : i32, i32
  }
}

</mosaic_0001>

<llo_original>
// kernel: tpu_custom_call.1
$region0: #{tpu_custom_call.1}
  #allocation0 [shape = 'u32[]', space=smem, size = 0x4, offset = 0x4, fixed_abs, tag = 'smem constant byte address 0x4 - core index']
  #allocation1 [shape = 'u32[144,128]{1,0:T(1,128)}', space=vmem, size = 0x12000, scoped, tag = 'internal scratch']
  %s0 = inlined_call_operand.vmem [shape: bf16[2048,147], index: 0, kind: input, shape index: {}]
  %s1 = inlined_call_operand.vmem [shape: bf16[147,64], index: 1, kind: input, shape index: {}]
  %s2 = inlined_call_operand.vmem [shape: f32[1,64], index: 2, kind: input, shape index: {}]
  %s3 = inlined_call_operand.vmem [shape: bf16[2048,64], index: 3, kind: output, shape index: {}]
  %s4 = sld [smem:[#allocation0]]
  $region45: #{tpu_custom_call.1} parent=0
    _
  %s6 = ssub.s32 1, %s4
  %s7 = scalar_select 0, %s6, %s4
  loop: start=0, step=1, limit=4
  $region2: #{tpu_custom_call.1} parent=0 // loop_pre_header
    _
  $region3: #{tpu_custom_call.1} parent=0 // loop_header
    %s9 = sphi 0, %s13
    %p10 = scmp.ge.s32.totalorder %s9, 4
    %s16 = sphi 0, %s28
    %s17 = sphi 0, %s24
    %s18 = sphi 0, %s16
    %s19 = sphi 0, %s17
    %s20 = sphi 0, %s18
    %s21 = sphi 0, %s19
    %s31 = sphi 0, %s33
    %s34 = sphi 0, %s31
    %s35 = sphi 0, %s34
    %s51 = sphi 0, %s35
    %s57 = sphi 0, %s59
    %s60 = sphi 0, %s57
    %s61 = sphi 0, %s60
    %s77 = sphi 0, %s61
    %s83 = sphi 0, %s85
    %s86 = sphi 0, %s83
    %s87 = sphi 0, %s86
    %s103 = sphi 0, %s87
    %s111 = sphi 0, %s113
    %s114 = sphi 0, %s111
    %s115 = sphi 0, %s114
    %s131 = sphi 0, %s115
  $region4: #{tpu_custom_call.1} parent=0 // loop_header_branch
    %12 = sbr.rel (%p10) target = $region8
  $region5: #{tpu_custom_call.1} parent=0 // loop_body
    %s14 = ssub.s32 %s9, 1
    %s15 = ssub.s32 %s9, 2
    %s22 = sadd.s32 1, %s17
    %p23 = scmp.ge.s32.totalorder %s22, 1
    %s24 = scalar_select %p23, 0, %s22
    %s25 = sadd.s32 1, %s16
    %s26 = scalar_select %p23, %s25, %s16
    %p27 = scmp.ge.s32.totalorder %s26, 2
    %s28 = scalar_select %p27, 0, %s26
    %s29 = ssub.s32 %s16, %s28
    %p30 = scmp.eq.s32.totalorder %s29, 0
    %s32 = sadd.s32 %s31, 1
    %s33 = scalar_select %p30, %s31, %s32
    %p36 = pneg %p30
    %p37 = scmp.eq.s32.totalorder %s9, 1
    %p38 = por %p36, %p37
    %p39 = scmp.ne.s32.totalorder %s31, %s34
    %p40 = scmp.eq.s32.totalorder %s9, 0
    %p41 = por %p39, %p40
    %p42 = scmp.ne.s32.totalorder %s31, %s34
    %p43 = scmp.eq.s32.totalorder %s14, 1
    %p44 = por %p42, %p43
    %p45 = scmp.ne.s32.totalorder %s34, %s35
    %p46 = scmp.eq.s32.totalorder %s14, 0
    %p47 = por %p45, %p46
    %p48 = scmp.ne.s32.totalorder %s34, %s35
    %p49 = scmp.eq.s32.totalorder %s15, 1
    %p50 = por %p48, %p49
    %p52 = scmp.ne.s32.totalorder %s35, %s51
    %p53 = scmp.eq.s32.totalorder %s15, 0
    %p54 = por %p52, %p53
    %s55 = ssub.s32 %s17, %s24
    %p56 = scmp.eq.s32.totalorder %s55, 0
    %s58 = sadd.s32 %s57, 1
    %s59 = scalar_select %p56, %s57, %s58
    %p62 = pneg %p56
    %p63 = scmp.eq.s32.totalorder %s9, 1
    %p64 = por %p62, %p63
    %p65 = scmp.ne.s32.totalorder %s57, %s60
    %p66 = scmp.eq.s32.totalorder %s9, 0
    %p67 = por %p65, %p66
    %p68 = scmp.ne.s32.totalorder %s57, %s60
    %p69 = scmp.eq.s32.totalorder %s14, 1
    %p70 = por %p68, %p69
    %p71 = scmp.ne.s32.totalorder %s60, %s61
    %p72 = scmp.eq.s32.totalorder %s14, 0
    %p73 = por %p71, %p72
    %p74 = scmp.ne.s32.totalorder %s60, %s61
    %p75 = scmp.eq.s32.totalorder %s15, 1
    %p76 = por %p74, %p75
    %p78 = scmp.ne.s32.totalorder %s61, %s77
    %p79 = scmp.eq.s32.totalorder %s15, 0
    %p80 = por %p78, %p79
    %s81 = ssub.s32 %s17, %s24
    %p82 = scmp.eq.s32.totalorder %s81, 0
    %s84 = sadd.s32 %s83, 1
    %s85 = scalar_select %p82, %s83, %s84
    %p88 = pneg %p82
    %p89 = scmp.eq.s32.totalorder %s9, 1
    %p90 = por %p88, %p89
    %p91 = scmp.ne.s32.totalorder %s83, %s86
    %p92 = scmp.eq.s32.totalorder %s9, 0
    %p93 = por %p91, %p92
    %p94 = scmp.ne.s32.totalorder %s83, %s86
    %p95 = scmp.eq.s32.totalorder %s14, 1
    %p96 = por %p94, %p95
    %p97 = scmp.ne.s32.totalorder %s86, %s87
    %p98 = scmp.eq.s32.totalorder %s14, 0
    %p99 = por %p97, %p98
    %p100 = scmp.ne.s32.totalorder %s86, %s87
    %p101 = scmp.eq.s32.totalorder %s15, 1
    %p102 = por %p100, %p101
    %p104 = scmp.ne.s32.totalorder %s87, %s103
    %p105 = scmp.eq.s32.totalorder %s15, 0
    %p106 = por %p104, %p105
    %s107 = ssub.s32 %s16, %s28
    %s108 = ssub.s32 %s17, %s24
    %s109 = sor.u32 %s107, %s108
    %p110 = scmp.eq.s32.totalorder %s109, 0
    %s112 = sadd.s32 %s111, 1
    %s113 = scalar_select %p110, %s111, %s112
    %p116 = pneg %p110
    %p117 = scmp.eq.s32.totalorder %s9, 1
    %p118 = por %p116, %p117
    %p119 = scmp.ne.s32.totalorder %s111, %s114
    %p120 = scmp.eq.s32.totalorder %s9, 0
    %p121 = por %p119, %p120
    %p122 = scmp.ne.s32.totalorder %s111, %s114
    %p123 = scmp.eq.s32.totalorder %s14, 1
    %p124 = por %p122, %p123
    %p125 = scmp.ne.s32.totalorder %s114, %s115
    %p126 = scmp.eq.s32.totalorder %s14, 0
    %p127 = por %p125, %p126
    %p128 = scmp.ne.s32.totalorder %s114, %s115
    %p129 = scmp.eq.s32.totalorder %s15, 1
    %p130 = por %p128, %p129
    %p132 = scmp.ne.s32.totalorder %s115, %s131
    %p133 = scmp.eq.s32.totalorder %s15, 0
    %p134 = por %p132, %p133
    %p135 = scmp.le.s32.totalorder 1, %s9
    %p136 = scmp.lt.s32.totalorder %s9, 3
    %p137 = pnand %p135, %p136
    %p138 = pneg %p137
    // Predicated region
    $region9: #{tpu_custom_call.1} parent=5 // pred_check
      _
    $region10: #{tpu_custom_call.1} parent=5 // pred_check_branch
      %140 = sbr.rel (%p137) target = $region12
    $region11: #{tpu_custom_call.1} parent=5 // pred_region
      %s141 = ssub.s32 %s9, 1
      // Predicated region
      $region13: #{tpu_custom_call.1} parent=11 // pred_check
        %p142 = pneg %p73
      $region14: #{tpu_custom_call.1} parent=11 // pred_check_branch
        %144 = sbr.rel (%p142) target = $region16
      $region15: #{tpu_custom_call.1} parent=11 // pred_region
        %p145 = scmp.lt.s32.totalorder %s19, 0
        %s146 = scalar_select %p145, %s19, 0
        %s147 = smul.addr %s146, 4
        %s148 = scalar_lea.vmem %s1, %s147
      $region16: #{tpu_custom_call.1} parent=11 // pred_fallthru
        _
      // Predicated region
      $region17: #{tpu_custom_call.1} parent=11 // pred_check
        %p149 = pneg %p99
      $region18: #{tpu_custom_call.1} parent=11 // pred_check_branch
        %151 = sbr.rel (%p149) target = $region20
      $region19: #{tpu_custom_call.1} parent=11 // pred_region
        %p152 = scmp.lt.s32.totalorder %s19, 0
        %s153 = scalar_select %p152, %s19, 0
        %s154 = scalar_lea.vmem %s2, %s153
      $region20: #{tpu_custom_call.1} parent=11 // pred_fallthru
        _
    $region12: #{tpu_custom_call.1} parent=5 // pred_fallthru
      _
    %p155 = scmp.lt.s32.totalorder %s9, 2
    // Predicated region
    $region21: #{tpu_custom_call.1} parent=5 // pred_check
      %p156 = pneg %p155
    $region22: #{tpu_custom_call.1} parent=5 // pred_check_branch
      %158 = sbr.rel (%p156) target = $region24
    $region23: #{tpu_custom_call.1} parent=5 // pred_region
      // Predicated region
      $region25: #{tpu_custom_call.1} parent=23 // pred_check
        %p159 = pneg %p41
      $region26: #{tpu_custom_call.1} parent=23 // pred_check_branch
        %161 = sbr.rel (%p159) target = $region28
      $region27: #{tpu_custom_call.1} parent=23 // pred_region
        %s162 = smul.u32 128, %s16
        %p163 = scmp.lt.s32.totalorder %s162, 255
        %s164 = scalar_select %p163, %s162, 255
        %s165 = smul.addr %s164, 2
        %s166 = smul.addr %s165, 4
        %s167 = scalar_lea.vmem %s0, %s166
        %s168 = smul.u32 128, %s16
      $region28: #{tpu_custom_call.1} parent=23 // pred_fallthru
        _
    $region24: #{tpu_custom_call.1} parent=5 // pred_fallthru
      _
    %p169 = scmp.le.s32.totalorder 1, %s9
    %p170 = scmp.lt.s32.totalorder %s9, 3
    %p171 = pnand %p169, %p170
    %p172 = pneg %p171
    // Predicated region
    $region29: #{tpu_custom_call.1} parent=5 // pred_check
      _
    $region30: #{tpu_custom_call.1} parent=5 // pred_check_branch
      %174 = sbr.rel (%p171) target = $region32
    $region31: #{tpu_custom_call.1} parent=5 // pred_region
      %s175 = ssub.s32 %s9, 1
      %s176 = smul.u32 128, %s18
      %p177 = scmp.lt.s32.totalorder %s176, 255
      %s178 = scalar_select %p177, %s176, 255
      %s179 = smul.addr %s178, 2
      %s180 = smul.addr %s179, 4
      %s181 = scalar_lea.vmem %s0, %s180
      %p182 = pneg %p47
      %p183 = pneg %p44
      %p184 = scmp.lt.s32.totalorder %s19, 0
      %s185 = scalar_select %p184, %s19, 0
      %s186 = smul.addr %s185, 4
      %s187 = scalar_lea.vmem %s1, %s186
      %p188 = pneg %p73
      %p189 = pneg %p70
      %p190 = scmp.lt.s32.totalorder %s19, 0
      %s191 = scalar_select %p190, %s19, 0
      %s192 = scalar_lea.vmem %s2, %s191
      %p193 = pneg %p99
      %p194 = pneg %p96
      %p195 = pneg %p127
      %p196 = pneg %p124
      %s197 = smul.u32 128, %s18
      %p198 = scmp.lt.s32.totalorder %s197, 255
      %s199 = scalar_select %p198, %s197, 255
      %p200 = scmp.lt.s32.totalorder %s19, 0
      %s201 = scalar_select %p200, %s19, 0
      %s202 = sadd.s32 %s201, %s199
      %s203 = smul.addr %s202, 4
      %s204 = scalar_lea.vmem %s3, %s203
      %s205 = smul.u32 128, %s18
      %p206 = scmp.lt.s32.totalorder %s205, 255
      %s207 = scalar_select %p206, %s205, 255
      %s208 = smul.addr %s207, 2
      %s209 = smul.addr %s208, 4
      %s210 = scalar_lea.vmem %s0, %s209
      %s211 = smul.u32 128, %s18
      %p212 = scmp.lt.s32.totalorder %s19, 0
      %s213 = scalar_select %p212, %s19, 0
      %s214 = smul.addr %s213, 4
      %s215 = scalar_lea.vmem %s1, %s214
      %p216 = scmp.lt.s32.totalorder %s19, 0
      %s217 = scalar_select %p216, %s19, 0
      %s218 = scalar_lea.vmem %s2, %s217
      %s219 = smul.u32 128, %s18
      %p220 = scmp.lt.s32.totalorder %s219, 255
      %s221 = scalar_select %p220, %s219, 255
      %p222 = scmp.lt.s32.totalorder %s19, 0
      %s223 = scalar_select %p222, %s19, 0
      %s224 = sadd.s32 %s223, %s221
      %s225 = smul.addr %s224, 4
      %s226 = scalar_lea.vmem %s3, %s225
      %s227 = smul.u32 128, %s18
      %v229 = vld [vmem:[%s210] sm:$0xff]
      %v230 = vld [vmem:[%s210 + $0x8] sm:$0xff]
      %v231 = vld [vmem:[%s210 + $0x10] sm:$0xff]
      %v232 = vld [vmem:[%s210 + $0x18] sm:$0xff]
      %v233 = vld [vmem:[%s210 + $0x20] sm:$0xff]
      %v234 = vld [vmem:[%s210 + $0x28] sm:$0xff]
      %v235 = vld [vmem:[%s210 + $0x30] sm:$0xff]
      %v236 = vld [vmem:[%s210 + $0x38] sm:$0xff]
      %v237 = vld [vmem:[%s210 + $0x40] sm:$0xff]
      %v238 = vld [vmem:[%s210 + $0x48] sm:$0xff]
      %v239 = vld [vmem:[%s210 + $0x50] sm:$0xff]
      %v240 = vld [vmem:[%s210 + $0x58] sm:$0xff]
      %v241 = vld [vmem:[%s210 + $0x60] sm:$0xff]
      %v242 = vld [vmem:[%s210 + $0x68] sm:$0xff]
      %v243 = vld [vmem:[%s210 + $0x70] sm:$0xff]
      %v244 = vld [vmem:[%s210 + $0x78] sm:$0xff]
      %v245 = vld [vmem:[%s210 + $0x80] sm:$0xff]
      %v246 = vld [vmem:[%s210 + $0x88] sm:$0xff]
      %v247 = vld [vmem:[%s210 + $0x90] sm:$0xff]
      %v248 = vld [vmem:[%s210 + $0x98] sm:$0xff]
      %v249 = vld [vmem:[%s210 + $0xa0] sm:$0xff]
      %v250 = vld [vmem:[%s210 + $0xa8] sm:$0xff]
      %v251 = vld [vmem:[%s210 + $0xb0] sm:$0xff]
      %v252 = vld [vmem:[%s210 + $0xb8] sm:$0xff]
      %v253 = vld [vmem:[%s210 + $0xc0] sm:$0xff]
      %v254 = vld [vmem:[%s210 + $0xc8] sm:$0xff]
      %v255 = vld [vmem:[%s210 + $0xd0] sm:$0xff]
      %v256 = vld [vmem:[%s210 + $0xd8] sm:$0xff]
      %v257 = vld [vmem:[%s210 + $0xe0] sm:$0xff]
      %v258 = vld [vmem:[%s210 + $0xe8] sm:$0xff]
      %v259 = vld [vmem:[%s210 + $0xf0] sm:$0xff]
      %v260 = vld [vmem:[%s210 + $0xf8] sm:$0xff]
      %v261 = vld [vmem:[%s210 + $0x100] sm:$0xff]
      %v262 = vld [vmem:[%s210 + $0x108] sm:$0xff]
      %v263 = vld [vmem:[%s210 + $0x110] sm:$0xff]
      %v264 = vld [vmem:[%s210 + $0x118] sm:$0xff]
      %v265 = vld [vmem:[%s210 + $0x120] sm:$0xff]
      %v266 = vld [vmem:[%s210 + $0x128] sm:$0xff]
      %v267 = vld [vmem:[%s210 + $0x130] sm:$0xff]
      %v268 = vld [vmem:[%s210 + $0x138] sm:$0xff]
      %v269 = vld [vmem:[%s210 + $0x140] sm:$0xff]
      %v270 = vld [vmem:[%s210 + $0x148] sm:$0xff]
      %v271 = vld [vmem:[%s210 + $0x150] sm:$0xff]
      %v272 = vld [vmem:[%s210 + $0x158] sm:$0xff]
      %v273 = vld [vmem:[%s210 + $0x160] sm:$0xff]
      %v274 = vld [vmem:[%s210 + $0x168] sm:$0xff]
      %v275 = vld [vmem:[%s210 + $0x170] sm:$0xff]
      %v276 = vld [vmem:[%s210 + $0x178] sm:$0xff]
      %v277 = vld [vmem:[%s210 + $0x180] sm:$0xff]
      %v278 = vld [vmem:[%s210 + $0x188] sm:$0xff]
      %v279 = vld [vmem:[%s210 + $0x190] sm:$0xff]
      %v280 = vld [vmem:[%s210 + $0x198] sm:$0xff]
      %v281 = vld [vmem:[%s210 + $0x1a0] sm:$0xff]
      %v282 = vld [vmem:[%s210 + $0x1a8] sm:$0xff]
      %v283 = vld [vmem:[%s210 + $0x1b0] sm:$0xff]
      %v284 = vld [vmem:[%s210 + $0x1b8] sm:$0xff]
      %v285 = vld [vmem:[%s210 + $0x1c0] sm:$0xff]
      %v286 = vld [vmem:[%s210 + $0x1c8] sm:$0xff]
      %v287 = vld [vmem:[%s210 + $0x1d0] sm:$0xff]
      %v288 = vld [vmem:[%s210 + $0x1d8] sm:$0xff]
      %v289 = vld [vmem:[%s210 + $0x1e0] sm:$0xff]
      %v290 = vld [vmem:[%s210 + $0x1e8] sm:$0xff]
      %v291 = vld [vmem:[%s210 + $0x1f0] sm:$0xff]
      %v292 = vld [vmem:[%s210 + $0x1f8] sm:$0xff]
      %v293 = vld [vmem:[%s210 + $0x200] sm:$0xff]
      %v294 = vld [vmem:[%s210 + $0x208] sm:$0xff]
      %v295 = vld [vmem:[%s210 + $0x210] sm:$0xff]
      %v296 = vld [vmem:[%s210 + $0x218] sm:$0xff]
      %v297 = vld [vmem:[%s210 + $0x220] sm:$0xff]
      %v298 = vld [vmem:[%s210 + $0x228] sm:$0xff]
      %v299 = vld [vmem:[%s210 + $0x230] sm:$0xff]
      %v300 = vld [vmem:[%s210 + $0x238] sm:$0xff]
      %v301 = vld [vmem:[%s210 + $0x240] sm:$0xff]
      %v302 = vld [vmem:[%s210 + $0x248] sm:$0xff]
      %v303 = vld [vmem:[%s210 + $0x250] sm:$0xff]
      %v304 = vld [vmem:[%s210 + $0x258] sm:$0xff]
      %v305 = vld [vmem:[%s210 + $0x260] sm:$0xff]
      %v306 = vld [vmem:[%s210 + $0x268] sm:$0xff]
      %v307 = vld [vmem:[%s210 + $0x270] sm:$0xff]
      %v308 = vld [vmem:[%s210 + $0x278] sm:$0xff]
      %v309 = vld [vmem:[%s210 + $0x280] sm:$0xff]
      %v310 = vld [vmem:[%s210 + $0x288] sm:$0xff]
      %v311 = vld [vmem:[%s210 + $0x290] sm:$0xff]
      %v312 = vld [vmem:[%s210 + $0x298] sm:$0xff]
      %v313 = vld [vmem:[%s210 + $0x2a0] sm:$0xff]
      %v314 = vld [vmem:[%s210 + $0x2a8] sm:$0xff]
      %v315 = vld [vmem:[%s210 + $0x2b0] sm:$0xff]
      %v316 = vld [vmem:[%s210 + $0x2b8] sm:$0xff]
      %v317 = vld [vmem:[%s210 + $0x2c0] sm:$0xff]
      %v318 = vld [vmem:[%s210 + $0x2c8] sm:$0xff]
      %v319 = vld [vmem:[%s210 + $0x2d0] sm:$0xff]
      %v320 = vld [vmem:[%s210 + $0x2d8] sm:$0xff]
      %v321 = vld [vmem:[%s210 + $0x2e0] sm:$0xff]
      %v322 = vld [vmem:[%s210 + $0x2e8] sm:$0xff]
      %v323 = vld [vmem:[%s210 + $0x2f0] sm:$0xff]
      %v324 = vld [vmem:[%s210 + $0x2f8] sm:$0xff]
      %v325 = vld [vmem:[%s210 + $0x300] sm:$0xff]
      %v326 = vld [vmem:[%s210 + $0x308] sm:$0xff]
      %v327 = vld [vmem:[%s210 + $0x310] sm:$0xff]
      %v328 = vld [vmem:[%s210 + $0x318] sm:$0xff]
      %v329 = vld [vmem:[%s210 + $0x320] sm:$0xff]
      %v330 = vld [vmem:[%s210 + $0x328] sm:$0xff]
      %v331 = vld [vmem:[%s210 + $0x330] sm:$0xff]
      %v332 = vld [vmem:[%s210 + $0x338] sm:$0xff]
      %v333 = vld [vmem:[%s210 + $0x340] sm:$0xff]
      %v334 = vld [vmem:[%s210 + $0x348] sm:$0xff]
      %v335 = vld [vmem:[%s210 + $0x350] sm:$0xff]
      %v336 = vld [vmem:[%s210 + $0x358] sm:$0xff]
      %v337 = vld [vmem:[%s210 + $0x360] sm:$0xff]
      %v338 = vld [vmem:[%s210 + $0x368] sm:$0xff]
      %v339 = vld [vmem:[%s210 + $0x370] sm:$0xff]
      %v340 = vld [vmem:[%s210 + $0x378] sm:$0xff]
      %v341 = vld [vmem:[%s210 + $0x380] sm:$0xff]
      %v342 = vld [vmem:[%s210 + $0x388] sm:$0xff]
      %v343 = vld [vmem:[%s210 + $0x390] sm:$0xff]
      %v344 = vld [vmem:[%s210 + $0x398] sm:$0xff]
      %v345 = vld [vmem:[%s210 + $0x3a0] sm:$0xff]
      %v346 = vld [vmem:[%s210 + $0x3a8] sm:$0xff]
      %v347 = vld [vmem:[%s210 + $0x3b0] sm:$0xff]
      %v348 = vld [vmem:[%s210 + $0x3b8] sm:$0xff]
      %v349 = vld [vmem:[%s210 + $0x3c0] sm:$0xff]
      %v350 = vld [vmem:[%s210 + $0x3c8] sm:$0xff]
      %v351 = vld [vmem:[%s210 + $0x3d0] sm:$0xff]
      %v352 = vld [vmem:[%s210 + $0x3d8] sm:$0xff]
      %v353 = vld [vmem:[%s210 + $0x3e0] sm:$0xff]
      %v354 = vld [vmem:[%s210 + $0x3e8] sm:$0xff]
      %v355 = vld [vmem:[%s210 + $0x3f0] sm:$0xff]
      %v356 = vld [vmem:[%s210 + $0x3f8] sm:$0xff]
      %v357 = vld [vmem:[%s215] sm:$0xf]
      %v358 = vld [vmem:[%s215 + $0x4] sm:$0xf]
      %v359 = vld [vmem:[%s215 + $0x8] sm:$0xf]
      %v360 = vld [vmem:[%s215 + $0xc] sm:$0xf]
      %v361 = vld [vmem:[%s215 + $0x10] sm:$0xf]
      %v362 = vld [vmem:[%s215 + $0x14] sm:$0xf]
      %v363 = vld [vmem:[%s215 + $0x18] sm:$0xf]
      %v364 = vld [vmem:[%s215 + $0x1c] sm:$0xf]
      %v365 = vld [vmem:[%s215 + $0x20] sm:$0xf]
      %v366 = vld [vmem:[%s215 + $0x24] sm:$0xf]
      %v367 = vld [vmem:[%s215 + $0x28] sm:$0xf]
      %v368 = vld [vmem:[%s215 + $0x2c] sm:$0xf]
      %v369 = vld [vmem:[%s215 + $0x30] sm:$0xf]
      %v370 = vld [vmem:[%s215 + $0x34] sm:$0xf]
      %v371 = vld [vmem:[%s215 + $0x38] sm:$0xf]
      %v372 = vld [vmem:[%s215 + $0x3c] sm:$0xf]
      %v373 = vld [vmem:[%s215 + $0x40] sm:$0xf]
      %v374 = vld [vmem:[%s215 + $0x44] sm:$0xf]
      %v375 = vld [vmem:[%s215 + $0x48] sm:$0x3]
      %v376 = vld [vmem:[%s218] sm:$0x1]
      %v378 = vlaneseq
      %v379 = vshrl.u32 %v378, 7
      %v380 = vsub.s32 0, %v379
      %v381 = vrot.slane %v376, %v380
      %v511 = vunpack.c.l.b16 %v229
      %v512 = vunpack.c.h.b16 %v229
      %v513 = vunpack.c.l.b16 %v230
      %v514 = vunpack.c.h.b16 %v230
      %v515 = vunpack.c.l.b16 %v231
      %v516 = vunpack.c.h.b16 %v231
      %v517 = vunpack.c.l.b16 %v232
      %v518 = vunpack.c.h.b16 %v232
      %v519 = vunpack.c.l.b16 %v233
      %v520 = vunpack.c.h.b16 %v233
      %v521 = vunpack.c.l.b16 %v234
      %v522 = vunpack.c.h.b16 %v234
      %v523 = vunpack.c.l.b16 %v235
      %v524 = vunpack.c.h.b16 %v235
      %v525 = vunpack.c.l.b16 %v236
      %v526 = vunpack.c.h.b16 %v236
      %v527 = vunpack.c.l.b16 %v237
      %v528 = vunpack.c.h.b16 %v237
      %v529 = vunpack.c.l.b16 %v238
      %v530 = vunpack.c.h.b16 %v238
      %v531 = vunpack.c.l.b16 %v239
      %v532 = vunpack.c.h.b16 %v239
      %v533 = vunpack.c.l.b16 %v240
      %v534 = vunpack.c.h.b16 %v240
      %v535 = vunpack.c.l.b16 %v241
      %v536 = vunpack.c.h.b16 %v241
      %v537 = vunpack.c.l.b16 %v242
      %v538 = vunpack.c.h.b16 %v242
      %v539 = vunpack.c.l.b16 %v243
      %v540 = vunpack.c.h.b16 %v243
      %v541 = vunpack.c.l.b16 %v244
      %v542 = vunpack.c.h.b16 %v244
      %v543 = vunpack.c.l.b16 %v245
      %v544 = vunpack.c.h.b16 %v245
      %v545 = vunpack.c.l.b16 %v246
      %v546 = vunpack.c.h.b16 %v246
      %v547 = vunpack.c.l.b16 %v247
      %v548 = vunpack.c.h.b16 %v247
      %v549 = vunpack.c.l.b16 %v248
      %v550 = vunpack.c.h.b16 %v248
      %v551 = vunpack.c.l.b16 %v249
      %v552 = vunpack.c.h.b16 %v249
      %v553 = vunpack.c.l.b16 %v250
      %v554 = vunpack.c.h.b16 %v250
      %v555 = vunpack.c.l.b16 %v251
      %v556 = vunpack.c.h.b16 %v251
      %v557 = vunpack.c.l.b16 %v252
      %v558 = vunpack.c.h.b16 %v252
      %v559 = vunpack.c.l.b16 %v253
      %v560 = vunpack.c.h.b16 %v253
      %v561 = vunpack.c.l.b16 %v254
      %v562 = vunpack.c.h.b16 %v254
      %v563 = vunpack.c.l.b16 %v255
      %v564 = vunpack.c.h.b16 %v255
      %v565 = vunpack.c.l.b16 %v256
      %v566 = vunpack.c.h.b16 %v256
      %v567 = vunpack.c.l.b16 %v257
      %v568 = vunpack.c.h.b16 %v257
      %v569 = vunpack.c.l.b16 %v258
      %v570 = vunpack.c.h.b16 %v258
      %v571 = vunpack.c.l.b16 %v259
      %v572 = vunpack.c.h.b16 %v259
      %v573 = vunpack.c.l.b16 %v260
      %v574 = vunpack.c.h.b16 %v260
      %v575 = vunpack.c.l.b16 %v261
      %v576 = vunpack.c.h.b16 %v261
      %v577 = vunpack.c.l.b16 %v262
      %v578 = vunpack.c.h.b16 %v262
      %v579 = vunpack.c.l.b16 %v263
      %v580 = vunpack.c.h.b16 %v263
      %v581 = vunpack.c.l.b16 %v264
      %v582 = vunpack.c.h.b16 %v264
      %v583 = vunpack.c.l.b16 %v265
      %v584 = vunpack.c.h.b16 %v265
      %v585 = vunpack.c.l.b16 %v266
      %v586 = vunpack.c.h.b16 %v266
      %v587 = vunpack.c.l.b16 %v267
      %v588 = vunpack.c.h.b16 %v267
      %v589 = vunpack.c.l.b16 %v268
      %v590 = vunpack.c.h.b16 %v268
      %v591 = vunpack.c.l.b16 %v269
      %v592 = vunpack.c.h.b16 %v269
      %v593 = vunpack.c.l.b16 %v270
      %v594 = vunpack.c.h.b16 %v270
      %v595 = vunpack.c.l.b16 %v271
      %v596 = vunpack.c.h.b16 %v271
      %v597 = vunpack.c.l.b16 %v272
      %v598 = vunpack.c.h.b16 %v272
      %v599 = vunpack.c.l.b16 %v273
      %v600 = vunpack.c.h.b16 %v273
      %v601 = vunpack.c.l.b16 %v274
      %v602 = vunpack.c.h.b16 %v274
      %v603 = vunpack.c.l.b16 %v275
      %v604 = vunpack.c.h.b16 %v275
      %v605 = vunpack.c.l.b16 %v276
      %v606 = vunpack.c.h.b16 %v276
      %v607 = vunpack.c.l.b16 %v277
      %v608 = vunpack.c.h.b16 %v277
      %v609 = vunpack.c.l.b16 %v278
      %v610 = vunpack.c.h.b16 %v278
      %v611 = vunpack.c.l.b16 %v279
      %v612 = vunpack.c.h.b16 %v279
      %v613 = vunpack.c.l.b16 %v280
      %v614 = vunpack.c.h.b16 %v280
      %v615 = vunpack.c.l.b16 %v281
      %v616 = vunpack.c.h.b16 %v281
      %v617 = vunpack.c.l.b16 %v282
      %v618 = vunpack.c.h.b16 %v282
      %v619 = vunpack.c.l.b16 %v283
      %v620 = vunpack.c.h.b16 %v283
      %v621 = vunpack.c.l.b16 %v284
      %v622 = vunpack.c.h.b16 %v284
      %v623 = vunpack.c.l.b16 %v285
      %v624 = vunpack.c.h.b16 %v285
      %v625 = vunpack.c.l.b16 %v286
      %v626 = vunpack.c.h.b16 %v286
      %v627 = vunpack.c.l.b16 %v287
      %v628 = vunpack.c.h.b16 %v287
      %v629 = vunpack.c.l.b16 %v288
      %v630 = vunpack.c.h.b16 %v288
      %v631 = vunpack.c.l.b16 %v289
      %v632 = vunpack.c.h.b16 %v289
      %v633 = vunpack.c.l.b16 %v290
      %v634 = vunpack.c.h.b16 %v290
      %v635 = vunpack.c.l.b16 %v291
      %v636 = vunpack.c.h.b16 %v291
      %v637 = vunpack.c.l.b16 %v292
      %v638 = vunpack.c.h.b16 %v292
      %v639 = vunpack.c.l.b16 %v293
      %v640 = vunpack.c.h.b16 %v293
      %v641 = vunpack.c.l.b16 %v294
      %v642 = vunpack.c.h.b16 %v294
      %v643 = vunpack.c.l.b16 %v295
      %v644 = vunpack.c.h.b16 %v295
      %v645 = vunpack.c.l.b16 %v296
      %v646 = vunpack.c.h.b16 %v296
      %v647 = vunpack.c.l.b16 %v297
      %v648 = vunpack.c.h.b16 %v297
      %v649 = vunpack.c.l.b16 %v298
      %v650 = vunpack.c.h.b16 %v298
      %v651 = vunpack.c.l.b16 %v299
      %v652 = vunpack.c.h.b16 %v299
      %v653 = vunpack.c.l.b16 %v300
      %v654 = vunpack.c.h.b16 %v300
      %v655 = vunpack.c.l.b16 %v301
      %v656 = vunpack.c.h.b16 %v301
      %v657 = vunpack.c.l.b16 %v302
      %v658 = vunpack.c.h.b16 %v302
      %v659 = vunpack.c.l.b16 %v303
      %v660 = vunpack.c.h.b16 %v303
      %v661 = vunpack.c.l.b16 %v304
      %v662 = vunpack.c.h.b16 %v304
      %v663 = vunpack.c.l.b16 %v305
      %v664 = vunpack.c.h.b16 %v305
      %v665 = vunpack.c.l.b16 %v306
      %v666 = vunpack.c.h.b16 %v306
      %v667 = vunpack.c.l.b16 %v307
      %v668 = vunpack.c.h.b16 %v307
      %v669 = vunpack.c.l.b16 %v308
      %v670 = vunpack.c.h.b16 %v308
      %v671 = vunpack.c.l.b16 %v309
      %v672 = vunpack.c.h.b16 %v309
      %v673 = vunpack.c.l.b16 %v310
      %v674 = vunpack.c.h.b16 %v310
      %v675 = vunpack.c.l.b16 %v311
      %v676 = vunpack.c.h.b16 %v311
      %v677 = vunpack.c.l.b16 %v312
      %v678 = vunpack.c.h.b16 %v312
      %v679 = vunpack.c.l.b16 %v313
      %v680 = vunpack.c.h.b16 %v313
      %v681 = vunpack.c.l.b16 %v314
      %v682 = vunpack.c.h.b16 %v314
      %v683 = vunpack.c.l.b16 %v315
      %v684 = vunpack.c.h.b16 %v315
      %v685 = vunpack.c.l.b16 %v316
      %v686 = vunpack.c.h.b16 %v316
      %v687 = vunpack.c.l.b16 %v317
      %v688 = vunpack.c.h.b16 %v317
      %v689 = vunpack.c.l.b16 %v318
      %v690 = vunpack.c.h.b16 %v318
      %v691 = vunpack.c.l.b16 %v319
      %v692 = vunpack.c.h.b16 %v319
      %v693 = vunpack.c.l.b16 %v320
      %v694 = vunpack.c.h.b16 %v320
      %v695 = vunpack.c.l.b16 %v321
      %v696 = vunpack.c.h.b16 %v321
      %v697 = vunpack.c.l.b16 %v322
      %v698 = vunpack.c.h.b16 %v322
      %v699 = vunpack.c.l.b16 %v323
      %v700 = vunpack.c.h.b16 %v323
      %v701 = vunpack.c.l.b16 %v324
      %v702 = vunpack.c.h.b16 %v324
      %v703 = vunpack.c.l.b16 %v325
      %v704 = vunpack.c.h.b16 %v325
      %v705 = vunpack.c.l.b16 %v326
      %v706 = vunpack.c.h.b16 %v326
      %v707 = vunpack.c.l.b16 %v327
      %v708 = vunpack.c.h.b16 %v327
      %v709 = vunpack.c.l.b16 %v328
      %v710 = vunpack.c.h.b16 %v328
      %v711 = vunpack.c.l.b16 %v329
      %v712 = vunpack.c.h.b16 %v329
      %v713 = vunpack.c.l.b16 %v330
      %v714 = vunpack.c.h.b16 %v330
      %v715 = vunpack.c.l.b16 %v331
      %v716 = vunpack.c.h.b16 %v331
      %v717 = vunpack.c.l.b16 %v332
      %v718 = vunpack.c.h.b16 %v332
      %v719 = vunpack.c.l.b16 %v333
      %v720 = vunpack.c.h.b16 %v333
      %v721 = vunpack.c.l.b16 %v334
      %v722 = vunpack.c.h.b16 %v334
      %v723 = vunpack.c.l.b16 %v335
      %v724 = vunpack.c.h.b16 %v335
      %v725 = vunpack.c.l.b16 %v336
      %v726 = vunpack.c.h.b16 %v336
      %v727 = vunpack.c.l.b16 %v337
      %v728 = vunpack.c.h.b16 %v337
      %v729 = vunpack.c.l.b16 %v338
      %v730 = vunpack.c.h.b16 %v338
      %v731 = vunpack.c.l.b16 %v339
      %v732 = vunpack.c.h.b16 %v339
      %v733 = vunpack.c.l.b16 %v340
      %v734 = vunpack.c.h.b16 %v340
      %v735 = vunpack.c.l.b16 %v341
      %v736 = vunpack.c.h.b16 %v341
      %v737 = vunpack.c.l.b16 %v342
      %v738 = vunpack.c.h.b16 %v342
      %v739 = vunpack.c.l.b16 %v343
      %v740 = vunpack.c.h.b16 %v343
      %v741 = vunpack.c.l.b16 %v344
      %v742 = vunpack.c.h.b16 %v344
      %v743 = vunpack.c.l.b16 %v345
      %v744 = vunpack.c.h.b16 %v345
      %v745 = vunpack.c.l.b16 %v346
      %v746 = vunpack.c.h.b16 %v346
      %v747 = vunpack.c.l.b16 %v347
      %v748 = vunpack.c.h.b16 %v347
      %v749 = vunpack.c.l.b16 %v348
      %v750 = vunpack.c.h.b16 %v348
      %v751 = vunpack.c.l.b16 %v349
      %v752 = vunpack.c.h.b16 %v349
      %v753 = vunpack.c.l.b16 %v350
      %v754 = vunpack.c.h.b16 %v350
      %v755 = vunpack.c.l.b16 %v351
      %v756 = vunpack.c.h.b16 %v351
      %v757 = vunpack.c.l.b16 %v352
      %v758 = vunpack.c.h.b16 %v352
      %v759 = vunpack.c.l.b16 %v353
      %v760 = vunpack.c.h.b16 %v353
      %v761 = vunpack.c.l.b16 %v354
      %v762 = vunpack.c.h.b16 %v354
      %v763 = vunpack.c.l.b16 %v355
      %v764 = vunpack.c.h.b16 %v355
      %v765 = vunpack.c.l.b16 %v356
      %v766 = vunpack.c.h.b16 %v356
      %v767 = vpack.c.b16 %v513, %v511
      %v768 = vpack.c.b16 %v514, %v512
      %v769 = vpack.c.b16 %v517, %v515
      %v770 = vpack.c.b16 %v518, %v516
      %v771 = vpack.c.b16 %v521, %v519
      %v772 = vpack.c.b16 %v522, %v520
      %v773 = vpack.c.b16 %v525, %v523
      %v774 = vpack.c.b16 %v526, %v524
      %v775 = vpack.c.b16 %v529, %v527
      %v776 = vpack.c.b16 %v530, %v528
      %v777 = vpack.c.b16 %v533, %v531
      %v778 = vpack.c.b16 %v534, %v532
      %v779 = vpack.c.b16 %v537, %v535
      %v780 = vpack.c.b16 %v538, %v536
      %v781 = vpack.c.b16 %v541, %v539
      %v782 = vpack.c.b16 %v542, %v540
      %v783 = vpack.c.b16 %v545, %v543
      %v784 = vpack.c.b16 %v546, %v544
      %v785 = vpack.c.b16 %v549, %v547
      %v786 = vpack.c.b16 %v550, %v548
      %v787 = vpack.c.b16 %v553, %v551
      %v788 = vpack.c.b16 %v554, %v552
      %v789 = vpack.c.b16 %v557, %v555
      %v790 = vpack.c.b16 %v558, %v556
      %v791 = vpack.c.b16 %v561, %v559
      %v792 = vpack.c.b16 %v562, %v560
      %v793 = vpack.c.b16 %v565, %v563
      %v794 = vpack.c.b16 %v566, %v564
      %v795 = vpack.c.b16 %v569, %v567
      %v796 = vpack.c.b16 %v570, %v568
      %v797 = vpack.c.b16 %v573, %v571
      %v798 = vpack.c.b16 %v574, %v572
      %v799 = vpack.c.b16 %v577, %v575
      %v800 = vpack.c.b16 %v578, %v576
      %v801 = vpack.c.b16 %v581, %v579
      %v802 = vpack.c.b16 %v582, %v580
      %v803 = vpack.c.b16 %v585, %v583
      %v804 = vpack.c.b16 %v586, %v584
      %v805 = vpack.c.b16 %v589, %v587
      %v806 = vpack.c.b16 %v590, %v588
      %v807 = vpack.c.b16 %v593, %v591
      %v808 = vpack.c.b16 %v594, %v592
      %v809 = vpack.c.b16 %v597, %v595
      %v810 = vpack.c.b16 %v598, %v596
      %v811 = vpack.c.b16 %v601, %v599
      %v812 = vpack.c.b16 %v602, %v600
      %v813 = vpack.c.b16 %v605, %v603
      %v814 = vpack.c.b16 %v606, %v604
      %v815 = vpack.c.b16 %v609, %v607
      %v816 = vpack.c.b16 %v610, %v608
      %v817 = vpack.c.b16 %v613, %v611
      %v818 = vpack.c.b16 %v614, %v612
      %v819 = vpack.c.b16 %v617, %v615
      %v820 = vpack.c.b16 %v618, %v616
      %v821 = vpack.c.b16 %v621, %v619
      %v822 = vpack.c.b16 %v622, %v620
      %v823 = vpack.c.b16 %v625, %v623
      %v824 = vpack.c.b16 %v626, %v624
      %v825 = vpack.c.b16 %v629, %v627
      %v826 = vpack.c.b16 %v630, %v628
      %v827 = vpack.c.b16 %v633, %v631
      %v828 = vpack.c.b16 %v634, %v632
      %v829 = vpack.c.b16 %v637, %v635
      %v830 = vpack.c.b16 %v638, %v636
      %v831 = vpack.c.b16 %v641, %v639
      %v832 = vpack.c.b16 %v642, %v640
      %v833 = vpack.c.b16 %v645, %v643
      %v834 = vpack.c.b16 %v646, %v644
      %v835 = vpack.c.b16 %v649, %v647
      %v836 = vpack.c.b16 %v650, %v648
      %v837 = vpack.c.b16 %v653, %v651
      %v838 = vpack.c.b16 %v654, %v652
      %v839 = vpack.c.b16 %v657, %v655
      %v840 = vpack.c.b16 %v658, %v656
      %v841 = vpack.c.b16 %v661, %v659
      %v842 = vpack.c.b16 %v662, %v660
      %v843 = vpack.c.b16 %v665, %v663
      %v844 = vpack.c.b16 %v666, %v664
      %v845 = vpack.c.b16 %v669, %v667
      %v846 = vpack.c.b16 %v670, %v668
      %v847 = vpack.c.b16 %v673, %v671
      %v848 = vpack.c.b16 %v674, %v672
      %v849 = vpack.c.b16 %v677, %v675
      %v850 = vpack.c.b16 %v678, %v676
      %v851 = vpack.c.b16 %v681, %v679
      %v852 = vpack.c.b16 %v682, %v680
      %v853 = vpack.c.b16 %v685, %v683
      %v854 = vpack.c.b16 %v686, %v684
      %v855 = vpack.c.b16 %v689, %v687
      %v856 = vpack.c.b16 %v690, %v688
      %v857 = vpack.c.b16 %v693, %v691
      %v858 = vpack.c.b16 %v694, %v692
      %v859 = vpack.c.b16 %v697, %v695
      %v860 = vpack.c.b16 %v698, %v696
      %v861 = vpack.c.b16 %v701, %v699
      %v862 = vpack.c.b16 %v702, %v700
      %v863 = vpack.c.b16 %v705, %v703
      %v864 = vpack.c.b16 %v706, %v704
      %v865 = vpack.c.b16 %v709, %v707
      %v866 = vpack.c.b16 %v710, %v708
      %v867 = vpack.c.b16 %v713, %v711
      %v868 = vpack.c.b16 %v714, %v712
      %v869 = vpack.c.b16 %v717, %v715
      %v870 = vpack.c.b16 %v718, %v716
      %v871 = vpack.c.b16 %v721, %v719
      %v872 = vpack.c.b16 %v722, %v720
      %v873 = vpack.c.b16 %v725, %v723
      %v874 = vpack.c.b16 %v726, %v724
      %v875 = vpack.c.b16 %v729, %v727
      %v876 = vpack.c.b16 %v730, %v728
      %v877 = vpack.c.b16 %v733, %v731
      %v878 = vpack.c.b16 %v734, %v732
      %v879 = vpack.c.b16 %v737, %v735
      %v880 = vpack.c.b16 %v738, %v736
      %v881 = vpack.c.b16 %v741, %v739
      %v882 = vpack.c.b16 %v742, %v740
      %v883 = vpack.c.b16 %v745, %v743
      %v884 = vpack.c.b16 %v746, %v744
      %v885 = vpack.c.b16 %v749, %v747
      %v886 = vpack.c.b16 %v750, %v748
      %v887 = vpack.c.b16 %v753, %v751
      %v888 = vpack.c.b16 %v754, %v752
      %v889 = vpack.c.b16 %v757, %v755
      %v890 = vpack.c.b16 %v758, %v756
      %v891 = vpack.c.b16 %v761, %v759
      %v892 = vpack.c.b16 %v762, %v760
      %v893 = vpack.c.b16 %v765, %v763
      %v894 = vpack.c.b16 %v766, %v764
      %v978 = vunpack.c.l.b16 %v357
      %v979 = vunpack.c.l.b16 %v358
      %v980 = vunpack.c.l.b16 %v359
      %v981 = vunpack.c.l.b16 %v360
      %v982 = vunpack.c.l.b16 %v361
      %v983 = vunpack.c.l.b16 %v362
      %v984 = vunpack.c.l.b16 %v363
      %v985 = vunpack.c.l.b16 %v364
      %v986 = vunpack.c.l.b16 %v365
      %v987 = vunpack.c.l.b16 %v366
      %v988 = vunpack.c.l.b16 %v367
      %v989 = vunpack.c.l.b16 %v368
      %v990 = vunpack.c.l.b16 %v369
      %v991 = vunpack.c.l.b16 %v370
      %v992 = vunpack.c.l.b16 %v371
      %v993 = vunpack.c.l.b16 %v372
      %v994 = vunpack.c.l.b16 %v373
      %v995 = vunpack.c.l.b16 %v374
      %v996 = vunpack.c.l.b16 %v375
      %v997 = vpack.c.b16 %v979, %v978
      %v998 = vpack.c.b16 %v981, %v980
      %v999 = vpack.c.b16 %v983, %v982
      %v1000 = vpack.c.b16 %v985, %v984
      %v1001 = vpack.c.b16 %v987, %v986
      %v1002 = vpack.c.b16 %v989, %v988
      %v1003 = vpack.c.b16 %v991, %v990
      %v1004 = vpack.c.b16 %v993, %v992
      %v1005 = vpack.c.b16 %v995, %v994
      %v1006 = vpack.c.b16 %v996, %v996
      %vm1016 = vcmask 154624
      %v1018 = vsel %vm1016, %v768, 0
      %v1021 = vsel %vm1016, %v770, 0
      %v1024 = vsel %vm1016, %v772, 0
      %v1027 = vsel %vm1016, %v774, 0
      %v1030 = vsel %vm1016, %v776, 0
      %v1033 = vsel %vm1016, %v778, 0
      %v1036 = vsel %vm1016, %v780, 0
      %v1039 = vsel %vm1016, %v782, 0
      %v1042 = vsel %vm1016, %v784, 0
      %v1045 = vsel %vm1016, %v786, 0
      %v1048 = vsel %vm1016, %v788, 0
      %v1051 = vsel %vm1016, %v790, 0
      %v1054 = vsel %vm1016, %v792, 0
      %v1057 = vsel %vm1016, %v794, 0
      %v1060 = vsel %vm1016, %v796, 0
      %v1063 = vsel %vm1016, %v798, 0
      %v1066 = vsel %vm1016, %v800, 0
      %v1069 = vsel %vm1016, %v802, 0
      %v1072 = vsel %vm1016, %v804, 0
      %v1075 = vsel %vm1016, %v806, 0
      %v1078 = vsel %vm1016, %v808, 0
      %v1081 = vsel %vm1016, %v810, 0
      %v1084 = vsel %vm1016, %v812, 0
      %v1087 = vsel %vm1016, %v814, 0
      %v1090 = vsel %vm1016, %v816, 0
      %v1093 = vsel %vm1016, %v818, 0
      %v1096 = vsel %vm1016, %v820, 0
      %v1099 = vsel %vm1016, %v822, 0
      %v1102 = vsel %vm1016, %v824, 0
      %v1105 = vsel %vm1016, %v826, 0
      %v1108 = vsel %vm1016, %v828, 0
      %v1111 = vsel %vm1016, %v830, 0
      %v1114 = vsel %vm1016, %v832, 0
      %v1117 = vsel %vm1016, %v834, 0
      %v1120 = vsel %vm1016, %v836, 0
      %v1123 = vsel %vm1016, %v838, 0
      %v1126 = vsel %vm1016, %v840, 0
      %v1129 = vsel %vm1016, %v842, 0
      %v1132 = vsel %vm1016, %v844, 0
      %v1135 = vsel %vm1016, %v846, 0
      %v1138 = vsel %vm1016, %v848, 0
      %v1141 = vsel %vm1016, %v850, 0
      %v1144 = vsel %vm1016, %v852, 0
      %v1147 = vsel %vm1016, %v854, 0
      %v1150 = vsel %vm1016, %v856, 0
      %v1153 = vsel %vm1016, %v858, 0
      %v1156 = vsel %vm1016, %v860, 0
      %v1159 = vsel %vm1016, %v862, 0
      %v1162 = vsel %vm1016, %v864, 0
      %v1165 = vsel %vm1016, %v866, 0
      %v1168 = vsel %vm1016, %v868, 0
      %v1171 = vsel %vm1016, %v870, 0
      %v1174 = vsel %vm1016, %v872, 0
      %v1177 = vsel %vm1016, %v874, 0
      %v1180 = vsel %vm1016, %v876, 0
      %v1183 = vsel %vm1016, %v878, 0
      %v1186 = vsel %vm1016, %v880, 0
      %v1189 = vsel %vm1016, %v882, 0
      %v1192 = vsel %vm1016, %v884, 0
      %v1195 = vsel %vm1016, %v886, 0
      %v1198 = vsel %vm1016, %v888, 0
      %v1201 = vsel %vm1016, %v890, 0
      %v1204 = vsel %vm1016, %v892, 0
      %v1207 = vsel %vm1016, %v894, 0
      %vm1209 = vcmask 1040384
      %vm1210 = vcmask 1041408
      %v1211 = vsel %vm1209, 4294967295, 65535
      %v1212 = vsel %vm1210, %v1211, 0
      %v1214 = vand.u32 %v1006, %v1212
      %1216 = vmatprep.subr.bf16.mxu0 0
      %1217 = vmatpush1.bf16.msra.mxu0 %v1004
      %1218 = vmatprep.subr.bf16.mxu0 0
      %1219 = vmatpush1.bf16.msra.mxu0 %v1003
      %1220 = vmatprep.subr.bf16.mxu0 0
      %1221 = vmatpush1.bf16.msra.mxu0 %v1002
      %1222 = vmatprep.subr.bf16.mxu0 0
      %1223 = vmatpush1.bf16.msra.mxu0 %v1001
      %1224 = vmatprep.subr.bf16.mxu0 0
      %1225 = vmatpush1.bf16.msra.mxu0 %v1000
      %1226 = vmatprep.subr.bf16.mxu0 0
      %1227 = vmatpush1.bf16.msra.mxu0 %v999
      %1228 = vmatprep.subr.bf16.mxu0 0
      %1229 = vmatpush1.bf16.msra.mxu0 %v998
      %1230 = vmatprep.subr.bf16.mxu0 0
      %1231 = vmatpush1.bf16.msra.mxu0 %v997
      %1232 = vmatprep.subr.bf16.mxu0 0
      %1233 = vmatpush2.bf16.msra.mxu0 0
      %1234 = vmatprep.subr.bf16.mxu0 0
      %1235 = vmatpush2.bf16.msra.mxu0 0
      %1236 = vmatprep.subr.bf16.mxu0 0
      %1237 = vmatpush2.bf16.msra.mxu0 0
      %1238 = vmatprep.subr.bf16.mxu0 0
      %1239 = vmatpush2.bf16.msra.mxu0 0
      %1240 = vmatprep.subr.bf16.mxu0 0
      %1241 = vmatpush2.bf16.msra.mxu0 0
      %1242 = vmatprep.subr.bf16.mxu0 0
      %1243 = vmatpush2.bf16.msra.mxu0 0
      %1244 = vmatprep.subr.bf16.mxu0 0
      %1245 = vmatpush2.bf16.msra.mxu0 %v1214
      %1246 = vmatprep.subr.bf16.mxu0 0
      %1247 = vmatpush2.bf16.msra.mxu0 %v1005
      %1248 = vmatprep.mubr.bf16.mxu0 %v1018
      %1249 = vmatmul.mubr.bf16.gmra.mxu0 %v767
      %v1250 = vpop.f32.mrf.mxu0
      %v1251 = vadd.f32 %v381, %v1250
      %v1252 = vpop.f32.mrf.mxu0
      %v1253 = vpop.f32.mrf.mxu0
      %v1254 = vadd.f32 %v381, %v1253
      %v1255 = vpop.f32.mrf.mxu0
      %1256 = vmatprep.mubr.bf16.mxu0 %v1021
      %1257 = vmatmul.mubr.bf16.gmra.mxu0 %v769
      %v1258 = vpop.f32.mrf.mxu0
      %v1259 = vadd.f32 %v381, %v1258
      %v1260 = vpop.f32.mrf.mxu0
      %v1261 = vpop.f32.mrf.mxu0
      %v1262 = vadd.f32 %v381, %v1261
      %v1263 = vpop.f32.mrf.mxu0
      %1264 = vmatprep.mubr.bf16.mxu0 %v1024
      %1265 = vmatmul.mubr.bf16.gmra.mxu0 %v771
      %v1266 = vpop.f32.mrf.mxu0
      %v1267 = vadd.f32 %v381, %v1266
      %v1268 = vpop.f32.mrf.mxu0
      %v1269 = vpop.f32.mrf.mxu0
      %v1270 = vadd.f32 %v381, %v1269
      %v1271 = vpop.f32.mrf.mxu0
      %1272 = vmatprep.mubr.bf16.mxu0 %v1027
      %1273 = vmatmul.mubr.bf16.gmra.mxu0 %v773
      %v1274 = vpop.f32.mrf.mxu0
      %v1275 = vadd.f32 %v381, %v1274
      %v1276 = vpop.f32.mrf.mxu0
      %v1277 = vpop.f32.mrf.mxu0
      %v1278 = vadd.f32 %v381, %v1277
      %v1279 = vpop.f32.mrf.mxu0
      %1280 = vmatprep.mubr.bf16.mxu0 %v1030
      %1281 = vmatmul.mubr.bf16.gmra.mxu0 %v775
      %v1282 = vpop.f32.mrf.mxu0
      %v1283 = vadd.f32 %v381, %v1282
      %v1284 = vpop.f32.mrf.mxu0
      %v1285 = vpop.f32.mrf.mxu0
      %v1286 = vadd.f32 %v381, %v1285
      %v1287 = vpop.f32.mrf.mxu0
      %1288 = vmatprep.mubr.bf16.mxu0 %v1033
      %1289 = vmatmul.mubr.bf16.gmra.mxu0 %v777
      %v1290 = vpop.f32.mrf.mxu0
      %v1291 = vadd.f32 %v381, %v1290
      %v1292 = vpop.f32.mrf.mxu0
      %v1293 = vpop.f32.mrf.mxu0
      %v1294 = vadd.f32 %v381, %v1293
      %v1295 = vpop.f32.mrf.mxu0
      %1296 = vmatprep.mubr.bf16.mxu0 %v1036
      %1297 = vmatmul.mubr.bf16.gmra.mxu0 %v779
      %v1298 = vpop.f32.mrf.mxu0
      %v1299 = vadd.f32 %v381, %v1298
      %v1300 = vpop.f32.mrf.mxu0
      %v1301 = vpop.f32.mrf.mxu0
      %v1302 = vadd.f32 %v381, %v1301
      %v1303 = vpop.f32.mrf.mxu0
      %1304 = vmatprep.mubr.bf16.mxu0 %v1039
      %1305 = vmatmul.mubr.bf16.gmra.mxu0 %v781
      %v1306 = vpop.f32.mrf.mxu0
      %v1307 = vadd.f32 %v381, %v1306
      %v1308 = vpop.f32.mrf.mxu0
      %v1309 = vpop.f32.mrf.mxu0
      %v1310 = vadd.f32 %v381, %v1309
      %v1311 = vpop.f32.mrf.mxu0
      %1312 = vmatprep.mubr.bf16.mxu0 %v1042
      %1313 = vmatmul.mubr.bf16.gmra.mxu0 %v783
      %v1314 = vpop.f32.mrf.mxu0
      %v1315 = vadd.f32 %v381, %v1314
      %v1316 = vpop.f32.mrf.mxu0
      %v1317 = vpop.f32.mrf.mxu0
      %v1318 = vadd.f32 %v381, %v1317
      %v1319 = vpop.f32.mrf.mxu0
      %1320 = vmatprep.mubr.bf16.mxu0 %v1045
      %1321 = vmatmul.mubr.bf16.gmra.mxu0 %v785
      %v1322 = vpop.f32.mrf.mxu0
      %v1323 = vadd.f32 %v381, %v1322
      %v1324 = vpop.f32.mrf.mxu0
      %v1325 = vpop.f32.mrf.mxu0
      %v1326 = vadd.f32 %v381, %v1325
      %v1327 = vpop.f32.mrf.mxu0
      %1328 = vmatprep.mubr.bf16.mxu0 %v1048
      %1329 = vmatmul.mubr.bf16.gmra.mxu0 %v787
      %v1330 = vpop.f32.mrf.mxu0
      %v1331 = vadd.f32 %v381, %v1330
      %v1332 = vpop.f32.mrf.mxu0
      %v1333 = vpop.f32.mrf.mxu0
      %v1334 = vadd.f32 %v381, %v1333
      %v1335 = vpop.f32.mrf.mxu0
      %1336 = vmatprep.mubr.bf16.mxu0 %v1051
      %1337 = vmatmul.mubr.bf16.gmra.mxu0 %v789
      %v1338 = vpop.f32.mrf.mxu0
      %v1339 = vadd.f32 %v381, %v1338
      %v1340 = vpop.f32.mrf.mxu0
      %v1341 = vpop.f32.mrf.mxu0
      %v1342 = vadd.f32 %v381, %v1341
      %v1343 = vpop.f32.mrf.mxu0
      %1344 = vmatprep.mubr.bf16.mxu0 %v1054
      %1345 = vmatmul.mubr.bf16.gmra.mxu0 %v791
      %v1346 = vpop.f32.mrf.mxu0
      %v1347 = vadd.f32 %v381, %v1346
      %v1348 = vpop.f32.mrf.mxu0
      %v1349 = vpop.f32.mrf.mxu0
      %v1350 = vadd.f32 %v381, %v1349
      %v1351 = vpop.f32.mrf.mxu0
      %1352 = vmatprep.mubr.bf16.mxu0 %v1057
      %1353 = vmatmul.mubr.bf16.gmra.mxu0 %v793
      %v1354 = vpop.f32.mrf.mxu0
      %v1355 = vadd.f32 %v381, %v1354
      %v1356 = vpop.f32.mrf.mxu0
      %v1357 = vpop.f32.mrf.mxu0
      %v1358 = vadd.f32 %v381, %v1357
      %v1359 = vpop.f32.mrf.mxu0
      %1360 = vmatprep.mubr.bf16.mxu0 %v1060
      %1361 = vmatmul.mubr.bf16.gmra.mxu0 %v795
      %v1362 = vpop.f32.mrf.mxu0
      %v1363 = vadd.f32 %v381, %v1362
      %v1364 = vpop.f32.mrf.mxu0
      %v1365 = vpop.f32.mrf.mxu0
      %v1366 = vadd.f32 %v381, %v1365
      %v1367 = vpop.f32.mrf.mxu0
      %1368 = vmatprep.mubr.bf16.mxu0 %v1063
      %1369 = vmatmul.mubr.bf16.gmra.mxu0 %v797
      %v1370 = vpop.f32.mrf.mxu0
      %v1371 = vadd.f32 %v381, %v1370
      %v1372 = vpop.f32.mrf.mxu0
      %v1373 = vpop.f32.mrf.mxu0
      %v1374 = vadd.f32 %v381, %v1373
      %v1375 = vpop.f32.mrf.mxu0
      %1376 = vmatprep.mubr.bf16.mxu0 %v1066
      %1377 = vmatmul.mubr.bf16.gmra.mxu0 %v799
      %v1378 = vpop.f32.mrf.mxu0
      %v1379 = vadd.f32 %v381, %v1378
      %v1380 = vpop.f32.mrf.mxu0
      %v1381 = vpop.f32.mrf.mxu0
      %v1382 = vadd.f32 %v381, %v1381
      %v1383 = vpop.f32.mrf.mxu0
      %1384 = vmatprep.mubr.bf16.mxu0 %v1069
      %1385 = vmatmul.mubr.bf16.gmra.mxu0 %v801
      %v1386 = vpop.f32.mrf.mxu0
      %v1387 = vadd.f32 %v381, %v1386
      %v1388 = vpop.f32.mrf.mxu0
      %v1389 = vpop.f32.mrf.mxu0
      %v1390 = vadd.f32 %v381, %v1389
      %v1391 = vpop.f32.mrf.mxu0
      %1392 = vmatprep.mubr.bf16.mxu0 %v1072
      %1393 = vmatmul.mubr.bf16.gmra.mxu0 %v803
      %v1394 = vpop.f32.mrf.mxu0
      %v1395 = vadd.f32 %v381, %v1394
      %v1396 = vpop.f32.mrf.mxu0
      %v1397 = vpop.f32.mrf.mxu0
      %v1398 = vadd.f32 %v381, %v1397
      %v1399 = vpop.f32.mrf.mxu0
      %1400 = vmatprep.mubr.bf16.mxu0 %v1075
      %1401 = vmatmul.mubr.bf16.gmra.mxu0 %v805
      %v1402 = vpop.f32.mrf.mxu0
      %v1403 = vadd.f32 %v381, %v1402
      %v1404 = vpop.f32.mrf.mxu0
      %v1405 = vpop.f32.mrf.mxu0
      %v1406 = vadd.f32 %v381, %v1405
      %v1407 = vpop.f32.mrf.mxu0
      %1408 = vmatprep.mubr.bf16.mxu0 %v1078
      %1409 = vmatmul.mubr.bf16.gmra.mxu0 %v807
      %v1410 = vpop.f32.mrf.mxu0
      %v1411 = vadd.f32 %v381, %v1410
      %v1412 = vpop.f32.mrf.mxu0
      %v1413 = vpop.f32.mrf.mxu0
      %v1414 = vadd.f32 %v381, %v1413
      %v1415 = vpop.f32.mrf.mxu0
      %1416 = vmatprep.mubr.bf16.mxu0 %v1081
      %1417 = vmatmul.mubr.bf16.gmra.mxu0 %v809
      %v1418 = vpop.f32.mrf.mxu0
      %v1419 = vadd.f32 %v381, %v1418
      %v1420 = vpop.f32.mrf.mxu0
      %v1421 = vpop.f32.mrf.mxu0
      %v1422 = vadd.f32 %v381, %v1421
      %v1423 = vpop.f32.mrf.mxu0
      %1424 = vmatprep.mubr.bf16.mxu0 %v1084
      %1425 = vmatmul.mubr.bf16.gmra.mxu0 %v811
      %v1426 = vpop.f32.mrf.mxu0
      %v1427 = vadd.f32 %v381, %v1426
      %v1428 = vpop.f32.mrf.mxu0
      %v1429 = vpop.f32.mrf.mxu0
      %v1430 = vadd.f32 %v381, %v1429
      %v1431 = vpop.f32.mrf.mxu0
      %1432 = vmatprep.mubr.bf16.mxu0 %v1087
      %1433 = vmatmul.mubr.bf16.gmra.mxu0 %v813
      %v1434 = vpop.f32.mrf.mxu0
      %v1435 = vadd.f32 %v381, %v1434
      %v1436 = vpop.f32.mrf.mxu0
      %v1437 = vpop.f32.mrf.mxu0
      %v1438 = vadd.f32 %v381, %v1437
      %v1439 = vpop.f32.mrf.mxu0
      %1440 = vmatprep.mubr.bf16.mxu0 %v1090
      %1441 = vmatmul.mubr.bf16.gmra.mxu0 %v815
      %v1442 = vpop.f32.mrf.mxu0
      %v1443 = vadd.f32 %v381, %v1442
      %v1444 = vpop.f32.mrf.mxu0
      %v1445 = vpop.f32.mrf.mxu0
      %v1446 = vadd.f32 %v381, %v1445
      %v1447 = vpop.f32.mrf.mxu0
      %1448 = vmatprep.mubr.bf16.mxu0 %v1093
      %1449 = vmatmul.mubr.bf16.gmra.mxu0 %v817
      %v1450 = vpop.f32.mrf.mxu0
      %v1451 = vadd.f32 %v381, %v1450
      %v1452 = vpop.f32.mrf.mxu0
      %v1453 = vpop.f32.mrf.mxu0
      %v1454 = vadd.f32 %v381, %v1453
      %v1455 = vpop.f32.mrf.mxu0
      %1456 = vmatprep.mubr.bf16.mxu0 %v1096
      %1457 = vmatmul.mubr.bf16.gmra.mxu0 %v819
      %v1458 = vpop.f32.mrf.mxu0
      %v1459 = vadd.f32 %v381, %v1458
      %v1460 = vpop.f32.mrf.mxu0
      %v1461 = vpop.f32.mrf.mxu0
      %v1462 = vadd.f32 %v381, %v1461
      %v1463 = vpop.f32.mrf.mxu0
      %1464 = vmatprep.mubr.bf16.mxu0 %v1099
      %1465 = vmatmul.mubr.bf16.gmra.mxu0 %v821
      %v1466 = vpop.f32.mrf.mxu0
      %v1467 = vadd.f32 %v381, %v1466
      %v1468 = vpop.f32.mrf.mxu0
      %v1469 = vpop.f32.mrf.mxu0
      %v1470 = vadd.f32 %v381, %v1469
      %v1471 = vpop.f32.mrf.mxu0
      %1472 = vmatprep.mubr.bf16.mxu0 %v1102
      %1473 = vmatmul.mubr.bf16.gmra.mxu0 %v823
      %v1474 = vpop.f32.mrf.mxu0
      %v1475 = vadd.f32 %v381, %v1474
      %v1476 = vpop.f32.mrf.mxu0
      %v1477 = vpop.f32.mrf.mxu0
      %v1478 = vadd.f32 %v381, %v1477
      %v1479 = vpop.f32.mrf.mxu0
      %1480 = vmatprep.mubr.bf16.mxu0 %v1105
      %1481 = vmatmul.mubr.bf16.gmra.mxu0 %v825
      %v1482 = vpop.f32.mrf.mxu0
      %v1483 = vadd.f32 %v381, %v1482
      %v1484 = vpop.f32.mrf.mxu0
      %v1485 = vpop.f32.mrf.mxu0
      %v1486 = vadd.f32 %v381, %v1485
      %v1487 = vpop.f32.mrf.mxu0
      %1488 = vmatprep.mubr.bf16.mxu0 %v1108
      %1489 = vmatmul.mubr.bf16.gmra.mxu0 %v827
      %v1490 = vpop.f32.mrf.mxu0
      %v1491 = vadd.f32 %v381, %v1490
      %v1492 = vpop.f32.mrf.mxu0
      %v1493 = vpop.f32.mrf.mxu0
      %v1494 = vadd.f32 %v381, %v1493
      %v1495 = vpop.f32.mrf.mxu0
      %1496 = vmatprep.mubr.bf16.mxu0 %v1111
      %1497 = vmatmul.mubr.bf16.gmra.mxu0 %v829
      %v1498 = vpop.f32.mrf.mxu0
      %v1499 = vadd.f32 %v381, %v1498
      %v1500 = vpop.f32.mrf.mxu0
      %v1501 = vpop.f32.mrf.mxu0
      %v1502 = vadd.f32 %v381, %v1501
      %v1503 = vpop.f32.mrf.mxu0
      %1504 = vmatprep.mubr.bf16.mxu0 %v1114
      %1505 = vmatmul.mubr.bf16.gmra.mxu0 %v831
      %v1506 = vpop.f32.mrf.mxu0
      %v1507 = vadd.f32 %v381, %v1506
      %v1508 = vpop.f32.mrf.mxu0
      %v1509 = vpop.f32.mrf.mxu0
      %v1510 = vadd.f32 %v381, %v1509
      %v1511 = vpop.f32.mrf.mxu0
      %1512 = vmatprep.mubr.bf16.mxu0 %v1117
      %1513 = vmatmul.mubr.bf16.gmra.mxu0 %v833
      %v1514 = vpop.f32.mrf.mxu0
      %v1515 = vadd.f32 %v381, %v1514
      %v1516 = vpop.f32.mrf.mxu0
      %v1517 = vpop.f32.mrf.mxu0
      %v1518 = vadd.f32 %v381, %v1517
      %v1519 = vpop.f32.mrf.mxu0
      %1520 = vmatprep.mubr.bf16.mxu0 %v1120
      %1521 = vmatmul.mubr.bf16.gmra.mxu0 %v835
      %v1522 = vpop.f32.mrf.mxu0
      %v1523 = vadd.f32 %v381, %v1522
      %v1524 = vpop.f32.mrf.mxu0
      %v1525 = vpop.f32.mrf.mxu0
      %v1526 = vadd.f32 %v381, %v1525
      %v1527 = vpop.f32.mrf.mxu0
      %1528 = vmatprep.mubr.bf16.mxu0 %v1123
      %1529 = vmatmul.mubr.bf16.gmra.mxu0 %v837
      %v1530 = vpop.f32.mrf.mxu0
      %v1531 = vadd.f32 %v381, %v1530
      %v1532 = vpop.f32.mrf.mxu0
      %v1533 = vpop.f32.mrf.mxu0
      %v1534 = vadd.f32 %v381, %v1533
      %v1535 = vpop.f32.mrf.mxu0
      %1536 = vmatprep.mubr.bf16.mxu0 %v1126
      %1537 = vmatmul.mubr.bf16.gmra.mxu0 %v839
      %v1538 = vpop.f32.mrf.mxu0
      %v1539 = vadd.f32 %v381, %v1538
      %v1540 = vpop.f32.mrf.mxu0
      %v1541 = vpop.f32.mrf.mxu0
      %v1542 = vadd.f32 %v381, %v1541
      %v1543 = vpop.f32.mrf.mxu0
      %1544 = vmatprep.mubr.bf16.mxu0 %v1129
      %1545 = vmatmul.mubr.bf16.gmra.mxu0 %v841
      %v1546 = vpop.f32.mrf.mxu0
      %v1547 = vadd.f32 %v381, %v1546
      %v1548 = vpop.f32.mrf.mxu0
      %v1549 = vpop.f32.mrf.mxu0
      %v1550 = vadd.f32 %v381, %v1549
      %v1551 = vpop.f32.mrf.mxu0
      %1552 = vmatprep.mubr.bf16.mxu0 %v1132
      %1553 = vmatmul.mubr.bf16.gmra.mxu0 %v843
      %v1554 = vpop.f32.mrf.mxu0
      %v1555 = vadd.f32 %v381, %v1554
      %v1556 = vpop.f32.mrf.mxu0
      %v1557 = vpop.f32.mrf.mxu0
      %v1558 = vadd.f32 %v381, %v1557
      %v1559 = vpop.f32.mrf.mxu0
      %1560 = vmatprep.mubr.bf16.mxu0 %v1135
      %1561 = vmatmul.mubr.bf16.gmra.mxu0 %v845
      %v1562 = vpop.f32.mrf.mxu0
      %v1563 = vadd.f32 %v381, %v1562
      %v1564 = vpop.f32.mrf.mxu0
      %v1565 = vpop.f32.mrf.mxu0
      %v1566 = vadd.f32 %v381, %v1565
      %v1567 = vpop.f32.mrf.mxu0
      %1568 = vmatprep.mubr.bf16.mxu0 %v1138
      %1569 = vmatmul.mubr.bf16.gmra.mxu0 %v847
      %v1570 = vpop.f32.mrf.mxu0
      %v1571 = vadd.f32 %v381, %v1570
      %v1572 = vpop.f32.mrf.mxu0
      %v1573 = vpop.f32.mrf.mxu0
      %v1574 = vadd.f32 %v381, %v1573
      %v1575 = vpop.f32.mrf.mxu0
      %1576 = vmatprep.mubr.bf16.mxu0 %v1141
      %1577 = vmatmul.mubr.bf16.gmra.mxu0 %v849
      %v1578 = vpop.f32.mrf.mxu0
      %v1579 = vadd.f32 %v381, %v1578
      %v1580 = vpop.f32.mrf.mxu0
      %v1581 = vpop.f32.mrf.mxu0
      %v1582 = vadd.f32 %v381, %v1581
      %v1583 = vpop.f32.mrf.mxu0
      %1584 = vmatprep.mubr.bf16.mxu0 %v1144
      %1585 = vmatmul.mubr.bf16.gmra.mxu0 %v851
      %v1586 = vpop.f32.mrf.mxu0
      %v1587 = vadd.f32 %v381, %v1586
      %v1588 = vpop.f32.mrf.mxu0
      %v1589 = vpop.f32.mrf.mxu0
      %v1590 = vadd.f32 %v381, %v1589
      %v1591 = vpop.f32.mrf.mxu0
      %1592 = vmatprep.mubr.bf16.mxu0 %v1147
      %1593 = vmatmul.mubr.bf16.gmra.mxu0 %v853
      %v1594 = vpop.f32.mrf.mxu0
      %v1595 = vadd.f32 %v381, %v1594
      %v1596 = vpop.f32.mrf.mxu0
      %v1597 = vpop.f32.mrf.mxu0
      %v1598 = vadd.f32 %v381, %v1597
      %v1599 = vpop.f32.mrf.mxu0
      %1600 = vmatprep.mubr.bf16.mxu0 %v1150
      %1601 = vmatmul.mubr.bf16.gmra.mxu0 %v855
      %v1602 = vpop.f32.mrf.mxu0
      %v1603 = vadd.f32 %v381, %v1602
      %v1604 = vpop.f32.mrf.mxu0
      %v1605 = vpop.f32.mrf.mxu0
      %v1606 = vadd.f32 %v381, %v1605
      %v1607 = vpop.f32.mrf.mxu0
      %1608 = vmatprep.mubr.bf16.mxu0 %v1153
      %1609 = vmatmul.mubr.bf16.gmra.mxu0 %v857
      %v1610 = vpop.f32.mrf.mxu0
      %v1611 = vadd.f32 %v381, %v1610
      %v1612 = vpop.f32.mrf.mxu0
      %v1613 = vpop.f32.mrf.mxu0
      %v1614 = vadd.f32 %v381, %v1613
      %v1615 = vpop.f32.mrf.mxu0
      %1616 = vmatprep.mubr.bf16.mxu0 %v1156
      %1617 = vmatmul.mubr.bf16.gmra.mxu0 %v859
      %v1618 = vpop.f32.mrf.mxu0
      %v1619 = vadd.f32 %v381, %v1618
      %v1620 = vpop.f32.mrf.mxu0
      %v1621 = vpop.f32.mrf.mxu0
      %v1622 = vadd.f32 %v381, %v1621
      %v1623 = vpop.f32.mrf.mxu0
      %1624 = vmatprep.mubr.bf16.mxu0 %v1159
      %1625 = vmatmul.mubr.bf16.gmra.mxu0 %v861
      %v1626 = vpop.f32.mrf.mxu0
      %v1627 = vadd.f32 %v381, %v1626
      %v1628 = vpop.f32.mrf.mxu0
      %v1629 = vpop.f32.mrf.mxu0
      %v1630 = vadd.f32 %v381, %v1629
      %v1631 = vpop.f32.mrf.mxu0
      %1632 = vmatprep.mubr.bf16.mxu0 %v1162
      %1633 = vmatmul.mubr.bf16.gmra.mxu0 %v863
      %v1634 = vpop.f32.mrf.mxu0
      %v1635 = vadd.f32 %v381, %v1634
      %v1636 = vpop.f32.mrf.mxu0
      %v1637 = vpop.f32.mrf.mxu0
      %v1638 = vadd.f32 %v381, %v1637
      %v1639 = vpop.f32.mrf.mxu0
      %1640 = vmatprep.mubr.bf16.mxu0 %v1165
      %1641 = vmatmul.mubr.bf16.gmra.mxu0 %v865
      %v1642 = vpop.f32.mrf.mxu0
      %v1643 = vadd.f32 %v381, %v1642
      %v1644 = vpop.f32.mrf.mxu0
      %v1645 = vpop.f32.mrf.mxu0
      %v1646 = vadd.f32 %v381, %v1645
      %v1647 = vpop.f32.mrf.mxu0
      %1648 = vmatprep.mubr.bf16.mxu0 %v1168
      %1649 = vmatmul.mubr.bf16.gmra.mxu0 %v867
      %v1650 = vpop.f32.mrf.mxu0
      %v1651 = vadd.f32 %v381, %v1650
      %v1652 = vpop.f32.mrf.mxu0
      %v1653 = vpop.f32.mrf.mxu0
      %v1654 = vadd.f32 %v381, %v1653
      %v1655 = vpop.f32.mrf.mxu0
      %1656 = vmatprep.mubr.bf16.mxu0 %v1171
      %1657 = vmatmul.mubr.bf16.gmra.mxu0 %v869
      %v1658 = vpop.f32.mrf.mxu0
      %v1659 = vadd.f32 %v381, %v1658
      %v1660 = vpop.f32.mrf.mxu0
      %v1661 = vpop.f32.mrf.mxu0
      %v1662 = vadd.f32 %v381, %v1661
      %v1663 = vpop.f32.mrf.mxu0
      %1664 = vmatprep.mubr.bf16.mxu0 %v1174
      %1665 = vmatmul.mubr.bf16.gmra.mxu0 %v871
      %v1666 = vpop.f32.mrf.mxu0
      %v1667 = vadd.f32 %v381, %v1666
      %v1668 = vpop.f32.mrf.mxu0
      %v1669 = vpop.f32.mrf.mxu0
      %v1670 = vadd.f32 %v381, %v1669
      %v1671 = vpop.f32.mrf.mxu0
      %1672 = vmatprep.mubr.bf16.mxu0 %v1177
      %1673 = vmatmul.mubr.bf16.gmra.mxu0 %v873
      %v1674 = vpop.f32.mrf.mxu0
      %v1675 = vadd.f32 %v381, %v1674
      %v1676 = vpop.f32.mrf.mxu0
      %v1677 = vpop.f32.mrf.mxu0
      %v1678 = vadd.f32 %v381, %v1677
      %v1679 = vpop.f32.mrf.mxu0
      %1680 = vmatprep.mubr.bf16.mxu0 %v1180
      %1681 = vmatmul.mubr.bf16.gmra.mxu0 %v875
      %v1682 = vpop.f32.mrf.mxu0
      %v1683 = vadd.f32 %v381, %v1682
      %v1684 = vpop.f32.mrf.mxu0
      %v1685 = vpop.f32.mrf.mxu0
      %v1686 = vadd.f32 %v381, %v1685
      %v1687 = vpop.f32.mrf.mxu0
      %1688 = vmatprep.mubr.bf16.mxu0 %v1183
      %1689 = vmatmul.mubr.bf16.gmra.mxu0 %v877
      %v1690 = vpop.f32.mrf.mxu0
      %v1691 = vadd.f32 %v381, %v1690
      %v1692 = vpop.f32.mrf.mxu0
      %v1693 = vpop.f32.mrf.mxu0
      %v1694 = vadd.f32 %v381, %v1693
      %v1695 = vpop.f32.mrf.mxu0
      %1696 = vmatprep.mubr.bf16.mxu0 %v1186
      %1697 = vmatmul.mubr.bf16.gmra.mxu0 %v879
      %v1698 = vpop.f32.mrf.mxu0
      %v1699 = vadd.f32 %v381, %v1698
      %v1700 = vpop.f32.mrf.mxu0
      %v1701 = vpop.f32.mrf.mxu0
      %v1702 = vadd.f32 %v381, %v1701
      %v1703 = vpop.f32.mrf.mxu0
      %1704 = vmatprep.mubr.bf16.mxu0 %v1189
      %1705 = vmatmul.mubr.bf16.gmra.mxu0 %v881
      %v1706 = vpop.f32.mrf.mxu0
      %v1707 = vadd.f32 %v381, %v1706
      %v1708 = vpop.f32.mrf.mxu0
      %v1709 = vpop.f32.mrf.mxu0
      %v1710 = vadd.f32 %v381, %v1709
      %v1711 = vpop.f32.mrf.mxu0
      %1712 = vmatprep.mubr.bf16.mxu0 %v1192
      %1713 = vmatmul.mubr.bf16.gmra.mxu0 %v883
      %v1714 = vpop.f32.mrf.mxu0
      %v1715 = vadd.f32 %v381, %v1714
      %v1716 = vpop.f32.mrf.mxu0
      %v1717 = vpop.f32.mrf.mxu0
      %v1718 = vadd.f32 %v381, %v1717
      %v1719 = vpop.f32.mrf.mxu0
      %1720 = vmatprep.mubr.bf16.mxu0 %v1195
      %1721 = vmatmul.mubr.bf16.gmra.mxu0 %v885
      %v1722 = vpop.f32.mrf.mxu0
      %v1723 = vadd.f32 %v381, %v1722
      %v1724 = vpop.f32.mrf.mxu0
      %v1725 = vpop.f32.mrf.mxu0
      %v1726 = vadd.f32 %v381, %v1725
      %v1727 = vpop.f32.mrf.mxu0
      %1728 = vmatprep.mubr.bf16.mxu0 %v1198
      %1729 = vmatmul.mubr.bf16.gmra.mxu0 %v887
      %v1730 = vpop.f32.mrf.mxu0
      %v1731 = vadd.f32 %v381, %v1730
      %v1732 = vpop.f32.mrf.mxu0
      %v1733 = vpop.f32.mrf.mxu0
      %v1734 = vadd.f32 %v381, %v1733
      %v1735 = vpop.f32.mrf.mxu0
      %1736 = vmatprep.mubr.bf16.mxu0 %v1201
      %1737 = vmatmul.mubr.bf16.gmra.mxu0 %v889
      %v1738 = vpop.f32.mrf.mxu0
      %v1739 = vadd.f32 %v381, %v1738
      %v1740 = vpop.f32.mrf.mxu0
      %v1741 = vpop.f32.mrf.mxu0
      %v1742 = vadd.f32 %v381, %v1741
      %v1743 = vpop.f32.mrf.mxu0
      %1744 = vmatprep.mubr.bf16.mxu0 %v1204
      %1745 = vmatmul.mubr.bf16.gmra.mxu0 %v891
      %v1746 = vpop.f32.mrf.mxu0
      %v1747 = vadd.f32 %v381, %v1746
      %v1748 = vpop.f32.mrf.mxu0
      %v1749 = vpop.f32.mrf.mxu0
      %v1750 = vadd.f32 %v381, %v1749
      %v1751 = vpop.f32.mrf.mxu0
      %1752 = vmatprep.mubr.bf16.mxu0 %v1207
      %1753 = vmatmul.mubr.bf16.gmra.mxu0 %v893
      %v1754 = vpop.f32.mrf.mxu0
      %v1755 = vadd.f32 %v381, %v1754
      %v1756 = vpop.f32.mrf.mxu0
      %v1757 = vpop.f32.mrf.mxu0
      %v1758 = vadd.f32 %v381, %v1757
      %v1759 = vpop.f32.mrf.mxu0
      %1760 = vdwg.mxu0
      %v1761 = vpack.c.bf16 %v1254, %v1251
      %v1762 = vpack.c.bf16 %v1262, %v1259
      %v1763 = vpack.c.bf16 %v1270, %v1267
      %v1764 = vpack.c.bf16 %v1278, %v1275
      %v1765 = vpack.c.bf16 %v1286, %v1283
      %v1766 = vpack.c.bf16 %v1294, %v1291
      %v1767 = vpack.c.bf16 %v1302, %v1299
      %v1768 = vpack.c.bf16 %v1310, %v1307
      %v1769 = vpack.c.bf16 %v1318, %v1315
      %v1770 = vpack.c.bf16 %v1326, %v1323
      %v1771 = vpack.c.bf16 %v1334, %v1331
      %v1772 = vpack.c.bf16 %v1342, %v1339
      %v1773 = vpack.c.bf16 %v1350, %v1347
      %v1774 = vpack.c.bf16 %v1358, %v1355
      %v1775 = vpack.c.bf16 %v1366, %v1363
      %v1776 = vpack.c.bf16 %v1374, %v1371
      %v1777 = vpack.c.bf16 %v1382, %v1379
      %v1778 = vpack.c.bf16 %v1390, %v1387
      %v1779 = vpack.c.bf16 %v1398, %v1395
      %v1780 = vpack.c.bf16 %v1406, %v1403
      %v1781 = vpack.c.bf16 %v1414, %v1411
      %v1782 = vpack.c.bf16 %v1422, %v1419
      %v1783 = vpack.c.bf16 %v1430, %v1427
      %v1784 = vpack.c.bf16 %v1438, %v1435
      %v1785 = vpack.c.bf16 %v1446, %v1443
      %v1786 = vpack.c.bf16 %v1454, %v1451
      %v1787 = vpack.c.bf16 %v1462, %v1459
      %v1788 = vpack.c.bf16 %v1470, %v1467
      %v1789 = vpack.c.bf16 %v1478, %v1475
      %v1790 = vpack.c.bf16 %v1486, %v1483
      %v1791 = vpack.c.bf16 %v1494, %v1491
      %v1792 = vpack.c.bf16 %v1502, %v1499
      %v1793 = vpack.c.bf16 %v1510, %v1507
      %v1794 = vpack.c.bf16 %v1518, %v1515
      %v1795 = vpack.c.bf16 %v1526, %v1523
      %v1796 = vpack.c.bf16 %v1534, %v1531
      %v1797 = vpack.c.bf16 %v1542, %v1539
      %v1798 = vpack.c.bf16 %v1550, %v1547
      %v1799 = vpack.c.bf16 %v1558, %v1555
      %v1800 = vpack.c.bf16 %v1566, %v1563
      %v1801 = vpack.c.bf16 %v1574, %v1571
      %v1802 = vpack.c.bf16 %v1582, %v1579
      %v1803 = vpack.c.bf16 %v1590, %v1587
      %v1804 = vpack.c.bf16 %v1598, %v1595
      %v1805 = vpack.c.bf16 %v1606, %v1603
      %v1806 = vpack.c.bf16 %v1614, %v1611
      %v1807 = vpack.c.bf16 %v1622, %v1619
      %v1808 = vpack.c.bf16 %v1630, %v1627
      %v1809 = vpack.c.bf16 %v1638, %v1635
      %v1810 = vpack.c.bf16 %v1646, %v1643
      %v1811 = vpack.c.bf16 %v1654, %v1651
      %v1812 = vpack.c.bf16 %v1662, %v1659
      %v1813 = vpack.c.bf16 %v1670, %v1667
      %v1814 = vpack.c.bf16 %v1678, %v1675
      %v1815 = vpack.c.bf16 %v1686, %v1683
      %v1816 = vpack.c.bf16 %v1694, %v1691
      %v1817 = vpack.c.bf16 %v1702, %v1699
      %v1818 = vpack.c.bf16 %v1710, %v1707
      %v1819 = vpack.c.bf16 %v1718, %v1715
      %v1820 = vpack.c.bf16 %v1726, %v1723
      %v1821 = vpack.c.bf16 %v1734, %v1731
      %v1822 = vpack.c.bf16 %v1742, %v1739
      %v1823 = vpack.c.bf16 %v1750, %v1747
      %v1824 = vpack.c.bf16 %v1758, %v1755
      %v1889 = vunpack.c.l.b16 %v1761
      %v1890 = vunpack.c.h.b16 %v1761
      %v1891 = vunpack.c.l.b16 %v1762
      %v1892 = vunpack.c.h.b16 %v1762
      %v1893 = vunpack.c.l.b16 %v1763
      %v1894 = vunpack.c.h.b16 %v1763
      %v1895 = vunpack.c.l.b16 %v1764
      %v1896 = vunpack.c.h.b16 %v1764
      %v1897 = vunpack.c.l.b16 %v1765
      %v1898 = vunpack.c.h.b16 %v1765
      %v1899 = vunpack.c.l.b16 %v1766
      %v1900 = vunpack.c.h.b16 %v1766
      %v1901 = vunpack.c.l.b16 %v1767
      %v1902 = vunpack.c.h.b16 %v1767
      %v1903 = vunpack.c.l.b16 %v1768
      %v1904 = vunpack.c.h.b16 %v1768
      %v1905 = vunpack.c.l.b16 %v1769
      %v1906 = vunpack.c.h.b16 %v1769
      %v1907 = vunpack.c.l.b16 %v1770
      %v1908 = vunpack.c.h.b16 %v1770
      %v1909 = vunpack.c.l.b16 %v1771
      %v1910 = vunpack.c.h.b16 %v1771
      %v1911 = vunpack.c.l.b16 %v1772
      %v1912 = vunpack.c.h.b16 %v1772
      %v1913 = vunpack.c.l.b16 %v1773
      %v1914 = vunpack.c.h.b16 %v1773
      %v1915 = vunpack.c.l.b16 %v1774
      %v1916 = vunpack.c.h.b16 %v1774
      %v1917 = vunpack.c.l.b16 %v1775
      %v1918 = vunpack.c.h.b16 %v1775
      %v1919 = vunpack.c.l.b16 %v1776
      %v1920 = vunpack.c.h.b16 %v1776
      %v1921 = vunpack.c.l.b16 %v1777
      %v1922 = vunpack.c.h.b16 %v1777
      %v1923 = vunpack.c.l.b16 %v1778
      %v1924 = vunpack.c.h.b16 %v1778
      %v1925 = vunpack.c.l.b16 %v1779
      %v1926 = vunpack.c.h.b16 %v1779
      %v1927 = vunpack.c.l.b16 %v1780
      %v1928 = vunpack.c.h.b16 %v1780
      %v1929 = vunpack.c.l.b16 %v1781
      %v1930 = vunpack.c.h.b16 %v1781
      %v1931 = vunpack.c.l.b16 %v1782
      %v1932 = vunpack.c.h.b16 %v1782
      %v1933 = vunpack.c.l.b16 %v1783
      %v1934 = vunpack.c.h.b16 %v1783
      %v1935 = vunpack.c.l.b16 %v1784
      %v1936 = vunpack.c.h.b16 %v1784
      %v1937 = vunpack.c.l.b16 %v1785
      %v1938 = vunpack.c.h.b16 %v1785
      %v1939 = vunpack.c.l.b16 %v1786
      %v1940 = vunpack.c.h.b16 %v1786
      %v1941 = vunpack.c.l.b16 %v1787
      %v1942 = vunpack.c.h.b16 %v1787
      %v1943 = vunpack.c.l.b16 %v1788
      %v1944 = vunpack.c.h.b16 %v1788
      %v1945 = vunpack.c.l.b16 %v1789
      %v1946 = vunpack.c.h.b16 %v1789
      %v1947 = vunpack.c.l.b16 %v1790
      %v1948 = vunpack.c.h.b16 %v1790
      %v1949 = vunpack.c.l.b16 %v1791
      %v1950 = vunpack.c.h.b16 %v1791
      %v1951 = vunpack.c.l.b16 %v1792
      %v1952 = vunpack.c.h.b16 %v1792
      %v1953 = vunpack.c.l.b16 %v1793
      %v1954 = vunpack.c.h.b16 %v1793
      %v1955 = vunpack.c.l.b16 %v1794
      %v1956 = vunpack.c.h.b16 %v1794
      %v1957 = vunpack.c.l.b16 %v1795
      %v1958 = vunpack.c.h.b16 %v1795
      %v1959 = vunpack.c.l.b16 %v1796
      %v1960 = vunpack.c.h.b16 %v1796
      %v1961 = vunpack.c.l.b16 %v1797
      %v1962 = vunpack.c.h.b16 %v1797
      %v1963 = vunpack.c.l.b16 %v1798
      %v1964 = vunpack.c.h.b16 %v1798
      %v1965 = vunpack.c.l.b16 %v1799
      %v1966 = vunpack.c.h.b16 %v1799
      %v1967 = vunpack.c.l.b16 %v1800
      %v1968 = vunpack.c.h.b16 %v1800
      %v1969 = vunpack.c.l.b16 %v1801
      %v1970 = vunpack.c.h.b16 %v1801
      %v1971 = vunpack.c.l.b16 %v1802
      %v1972 = vunpack.c.h.b16 %v1802
      %v1973 = vunpack.c.l.b16 %v1803
      %v1974 = vunpack.c.h.b16 %v1803
      %v1975 = vunpack.c.l.b16 %v1804
      %v1976 = vunpack.c.h.b16 %v1804
      %v1977 = vunpack.c.l.b16 %v1805
      %v1978 = vunpack.c.h.b16 %v1805
      %v1979 = vunpack.c.l.b16 %v1806
      %v1980 = vunpack.c.h.b16 %v1806
      %v1981 = vunpack.c.l.b16 %v1807
      %v1982 = vunpack.c.h.b16 %v1807
      %v1983 = vunpack.c.l.b16 %v1808
      %v1984 = vunpack.c.h.b16 %v1808
      %v1985 = vunpack.c.l.b16 %v1809
      %v1986 = vunpack.c.h.b16 %v1809
      %v1987 = vunpack.c.l.b16 %v1810
      %v1988 = vunpack.c.h.b16 %v1810
      %v1989 = vunpack.c.l.b16 %v1811
      %v1990 = vunpack.c.h.b16 %v1811
      %v1991 = vunpack.c.l.b16 %v1812
      %v1992 = vunpack.c.h.b16 %v1812
      %v1993 = vunpack.c.l.b16 %v1813
      %v1994 = vunpack.c.h.b16 %v1813
      %v1995 = vunpack.c.l.b16 %v1814
      %v1996 = vunpack.c.h.b16 %v1814
      %v1997 = vunpack.c.l.b16 %v1815
      %v1998 = vunpack.c.h.b16 %v1815
      %v1999 = vunpack.c.l.b16 %v1816
      %v2000 = vunpack.c.h.b16 %v1816
      %v2001 = vunpack.c.l.b16 %v1817
      %v2002 = vunpack.c.h.b16 %v1817
      %v2003 = vunpack.c.l.b16 %v1818
      %v2004 = vunpack.c.h.b16 %v1818
      %v2005 = vunpack.c.l.b16 %v1819
      %v2006 = vunpack.c.h.b16 %v1819
      %v2007 = vunpack.c.l.b16 %v1820
      %v2008 = vunpack.c.h.b16 %v1820
      %v2009 = vunpack.c.l.b16 %v1821
      %v2010 = vunpack.c.h.b16 %v1821
      %v2011 = vunpack.c.l.b16 %v1822
      %v2012 = vunpack.c.h.b16 %v1822
      %v2013 = vunpack.c.l.b16 %v1823
      %v2014 = vunpack.c.h.b16 %v1823
      %v2015 = vunpack.c.l.b16 %v1824
      %v2016 = vunpack.c.h.b16 %v1824
      %v2017 = vpack.c.b16 %v1889, %v1889
      %v2018 = vpack.c.b16 %v1890, %v1890
      %v2019 = vpack.c.b16 %v1891, %v1891
      %v2020 = vpack.c.b16 %v1892, %v1892
      %v2021 = vpack.c.b16 %v1893, %v1893
      %v2022 = vpack.c.b16 %v1894, %v1894
      %v2023 = vpack.c.b16 %v1895, %v1895
      %v2024 = vpack.c.b16 %v1896, %v1896
      %v2025 = vpack.c.b16 %v1897, %v1897
      %v2026 = vpack.c.b16 %v1898, %v1898
      %v2027 = vpack.c.b16 %v1899, %v1899
      %v2028 = vpack.c.b16 %v1900, %v1900
      %v2029 = vpack.c.b16 %v1901, %v1901
      %v2030 = vpack.c.b16 %v1902, %v1902
      %v2031 = vpack.c.b16 %v1903, %v1903
      %v2032 = vpack.c.b16 %v1904, %v1904
      %v2033 = vpack.c.b16 %v1905, %v1905
      %v2034 = vpack.c.b16 %v1906, %v1906
      %v2035 = vpack.c.b16 %v1907, %v1907
      %v2036 = vpack.c.b16 %v1908, %v1908
      %v2037 = vpack.c.b16 %v1909, %v1909
      %v2038 = vpack.c.b16 %v1910, %v1910
      %v2039 = vpack.c.b16 %v1911, %v1911
      %v2040 = vpack.c.b16 %v1912, %v1912
      %v2041 = vpack.c.b16 %v1913, %v1913
      %v2042 = vpack.c.b16 %v1914, %v1914
      %v2043 = vpack.c.b16 %v1915, %v1915
      %v2044 = vpack.c.b16 %v1916, %v1916
      %v2045 = vpack.c.b16 %v1917, %v1917
      %v2046 = vpack.c.b16 %v1918, %v1918
      %v2047 = vpack.c.b16 %v1919, %v1919
      %v2048 = vpack.c.b16 %v1920, %v1920
      %v2049 = vpack.c.b16 %v1921, %v1921
      %v2050 = vpack.c.b16 %v1922, %v1922
      %v2051 = vpack.c.b16 %v1923, %v1923
      %v2052 = vpack.c.b16 %v1924, %v1924
      %v2053 = vpack.c.b16 %v1925, %v1925
      %v2054 = vpack.c.b16 %v1926, %v1926
      %v2055 = vpack.c.b16 %v1927, %v1927
      %v2056 = vpack.c.b16 %v1928, %v1928
      %v2057 = vpack.c.b16 %v1929, %v1929
      %v2058 = vpack.c.b16 %v1930, %v1930
      %v2059 = vpack.c.b16 %v1931, %v1931
      %v2060 = vpack.c.b16 %v1932, %v1932
      %v2061 = vpack.c.b16 %v1933, %v1933
      %v2062 = vpack.c.b16 %v1934, %v1934
      %v2063 = vpack.c.b16 %v1935, %v1935
      %v2064 = vpack.c.b16 %v1936, %v1936
      %v2065 = vpack.c.b16 %v1937, %v1937
      %v2066 = vpack.c.b16 %v1938, %v1938
      %v2067 = vpack.c.b16 %v1939, %v1939
      %v2068 = vpack.c.b16 %v1940, %v1940
      %v2069 = vpack.c.b16 %v1941, %v1941
      %v2070 = vpack.c.b16 %v1942, %v1942
      %v2071 = vpack.c.b16 %v1943, %v1943
      %v2072 = vpack.c.b16 %v1944, %v1944
      %v2073 = vpack.c.b16 %v1945, %v1945
      %v2074 = vpack.c.b16 %v1946, %v1946
      %v2075 = vpack.c.b16 %v1947, %v1947
      %v2076 = vpack.c.b16 %v1948, %v1948
      %v2077 = vpack.c.b16 %v1949, %v1949
      %v2078 = vpack.c.b16 %v1950, %v1950
      %v2079 = vpack.c.b16 %v1951, %v1951
      %v2080 = vpack.c.b16 %v1952, %v1952
      %v2081 = vpack.c.b16 %v1953, %v1953
      %v2082 = vpack.c.b16 %v1954, %v1954
      %v2083 = vpack.c.b16 %v1955, %v1955
      %v2084 = vpack.c.b16 %v1956, %v1956
      %v2085 = vpack.c.b16 %v1957, %v1957
      %v2086 = vpack.c.b16 %v1958, %v1958
      %v2087 = vpack.c.b16 %v1959, %v1959
      %v2088 = vpack.c.b16 %v1960, %v1960
      %v2089 = vpack.c.b16 %v1961, %v1961
      %v2090 = vpack.c.b16 %v1962, %v1962
      %v2091 = vpack.c.b16 %v1963, %v1963
      %v2092 = vpack.c.b16 %v1964, %v1964
      %v2093 = vpack.c.b16 %v1965, %v1965
      %v2094 = vpack.c.b16 %v1966, %v1966
      %v2095 = vpack.c.b16 %v1967, %v1967
      %v2096 = vpack.c.b16 %v1968, %v1968
      %v2097 = vpack.c.b16 %v1969, %v1969
      %v2098 = vpack.c.b16 %v1970, %v1970
      %v2099 = vpack.c.b16 %v1971, %v1971
      %v2100 = vpack.c.b16 %v1972, %v1972
      %v2101 = vpack.c.b16 %v1973, %v1973
      %v2102 = vpack.c.b16 %v1974, %v1974
      %v2103 = vpack.c.b16 %v1975, %v1975
      %v2104 = vpack.c.b16 %v1976, %v1976
      %v2105 = vpack.c.b16 %v1977, %v1977
      %v2106 = vpack.c.b16 %v1978, %v1978
      %v2107 = vpack.c.b16 %v1979, %v1979
      %v2108 = vpack.c.b16 %v1980, %v1980
      %v2109 = vpack.c.b16 %v1981, %v1981
      %v2110 = vpack.c.b16 %v1982, %v1982
      %v2111 = vpack.c.b16 %v1983, %v1983
      %v2112 = vpack.c.b16 %v1984, %v1984
      %v2113 = vpack.c.b16 %v1985, %v1985
      %v2114 = vpack.c.b16 %v1986, %v1986
      %v2115 = vpack.c.b16 %v1987, %v1987
      %v2116 = vpack.c.b16 %v1988, %v1988
      %v2117 = vpack.c.b16 %v1989, %v1989
      %v2118 = vpack.c.b16 %v1990, %v1990
      %v2119 = vpack.c.b16 %v1991, %v1991
      %v2120 = vpack.c.b16 %v1992, %v1992
      %v2121 = vpack.c.b16 %v1993, %v1993
      %v2122 = vpack.c.b16 %v1994, %v1994
      %v2123 = vpack.c.b16 %v1995, %v1995
      %v2124 = vpack.c.b16 %v1996, %v1996
      %v2125 = vpack.c.b16 %v1997, %v1997
      %v2126 = vpack.c.b16 %v1998, %v1998
      %v2127 = vpack.c.b16 %v1999, %v1999
      %v2128 = vpack.c.b16 %v2000, %v2000
      %v2129 = vpack.c.b16 %v2001, %v2001
      %v2130 = vpack.c.b16 %v2002, %v2002
      %v2131 = vpack.c.b16 %v2003, %v2003
      %v2132 = vpack.c.b16 %v2004, %v2004
      %v2133 = vpack.c.b16 %v2005, %v2005
      %v2134 = vpack.c.b16 %v2006, %v2006
      %v2135 = vpack.c.b16 %v2007, %v2007
      %v2136 = vpack.c.b16 %v2008, %v2008
      %v2137 = vpack.c.b16 %v2009, %v2009
      %v2138 = vpack.c.b16 %v2010, %v2010
      %v2139 = vpack.c.b16 %v2011, %v2011
      %v2140 = vpack.c.b16 %v2012, %v2012
      %v2141 = vpack.c.b16 %v2013, %v2013
      %v2142 = vpack.c.b16 %v2014, %v2014
      %v2143 = vpack.c.b16 %v2015, %v2015
      %v2144 = vpack.c.b16 %v2016, %v2016
      %vm2273 = vcmask 519168
      %2274 = vst.msk [vmem:[%s226] sm:$0xf] %vm2273, %v2017
      %2275 = vst.msk [vmem:[%s226 + $0x4] sm:$0xf] %vm2273, %v2018
      %2276 = vst.msk [vmem:[%s226 + $0x8] sm:$0xf] %vm2273, %v2019
      %2277 = vst.msk [vmem:[%s226 + $0xc] sm:$0xf] %vm2273, %v2020
      %2278 = vst.msk [vmem:[%s226 + $0x10] sm:$0xf] %vm2273, %v2021
      %2279 = vst.msk [vmem:[%s226 + $0x14] sm:$0xf] %vm2273, %v2022
      %2280 = vst.msk [vmem:[%s226 + $0x18] sm:$0xf] %vm2273, %v2023
      %2281 = vst.msk [vmem:[%s226 + $0x1c] sm:$0xf] %vm2273, %v2024
      %2282 = vst.msk [vmem:[%s226 + $0x20] sm:$0xf] %vm2273, %v2025
      %2283 = vst.msk [vmem:[%s226 + $0x24] sm:$0xf] %vm2273, %v2026
      %2284 = vst.msk [vmem:[%s226 + $0x28] sm:$0xf] %vm2273, %v2027
      %2285 = vst.msk [vmem:[%s226 + $0x2c] sm:$0xf] %vm2273, %v2028
      %2286 = vst.msk [vmem:[%s226 + $0x30] sm:$0xf] %vm2273, %v2029
      %2287 = vst.msk [vmem:[%s226 + $0x34] sm:$0xf] %vm2273, %v2030
      %2288 = vst.msk [vmem:[%s226 + $0x38] sm:$0xf] %vm2273, %v2031
      %2289 = vst.msk [vmem:[%s226 + $0x3c] sm:$0xf] %vm2273, %v2032
      %2290 = vst.msk [vmem:[%s226 + $0x40] sm:$0xf] %vm2273, %v2033
      %2291 = vst.msk [vmem:[%s226 + $0x44] sm:$0xf] %vm2273, %v2034
      %2292 = vst.msk [vmem:[%s226 + $0x48] sm:$0xf] %vm2273, %v2035
      %2293 = vst.msk [vmem:[%s226 + $0x4c] sm:$0xf] %vm2273, %v2036
      %2294 = vst.msk [vmem:[%s226 + $0x50] sm:$0xf] %vm2273, %v2037
      %2295 = vst.msk [vmem:[%s226 + $0x54] sm:$0xf] %vm2273, %v2038
      %2296 = vst.msk [vmem:[%s226 + $0x58] sm:$0xf] %vm2273, %v2039
      %2297 = vst.msk [vmem:[%s226 + $0x5c] sm:$0xf] %vm2273, %v2040
      %2298 = vst.msk [vmem:[%s226 + $0x60] sm:$0xf] %vm2273, %v2041
      %2299 = vst.msk [vmem:[%s226 + $0x64] sm:$0xf] %vm2273, %v2042
      %2300 = vst.msk [vmem:[%s226 + $0x68] sm:$0xf] %vm2273, %v2043
      %2301 = vst.msk [vmem:[%s226 + $0x6c] sm:$0xf] %vm2273, %v2044
      %2302 = vst.msk [vmem:[%s226 + $0x70] sm:$0xf] %vm2273, %v2045
      %2303 = vst.msk [vmem:[%s226 + $0x74] sm:$0xf] %vm2273, %v2046
      %2304 = vst.msk [vmem:[%s226 + $0x78] sm:$0xf] %vm2273, %v2047
      %2305 = vst.msk [vmem:[%s226 + $0x7c] sm:$0xf] %vm2273, %v2048
      %2306 = vst.msk [vmem:[%s226 + $0x80] sm:$0xf] %vm2273, %v2049
      %2307 = vst.msk [vmem:[%s226 + $0x84] sm:$0xf] %vm2273, %v2050
      %2308 = vst.msk [vmem:[%s226 + $0x88] sm:$0xf] %vm2273, %v2051
      %2309 = vst.msk [vmem:[%s226 + $0x8c] sm:$0xf] %vm2273, %v2052
      %2310 = vst.msk [vmem:[%s226 + $0x90] sm:$0xf] %vm2273, %v2053
      %2311 = vst.msk [vmem:[%s226 + $0x94] sm:$0xf] %vm2273, %v2054
      %2312 = vst.msk [vmem:[%s226 + $0x98] sm:$0xf] %vm2273, %v2055
      %2313 = vst.msk [vmem:[%s226 + $0x9c] sm:$0xf] %vm2273, %v2056
      %2314 = vst.msk [vmem:[%s226 + $0xa0] sm:$0xf] %vm2273, %v2057
      %2315 = vst.msk [vmem:[%s226 + $0xa4] sm:$0xf] %vm2273, %v2058
      %2316 = vst.msk [vmem:[%s226 + $0xa8] sm:$0xf] %vm2273, %v2059
      %2317 = vst.msk [vmem:[%s226 + $0xac] sm:$0xf] %vm2273, %v2060
      %2318 = vst.msk [vmem:[%s226 + $0xb0] sm:$0xf] %vm2273, %v2061
      %2319 = vst.msk [vmem:[%s226 + $0xb4] sm:$0xf] %vm2273, %v2062
      %2320 = vst.msk [vmem:[%s226 + $0xb8] sm:$0xf] %vm2273, %v2063
      %2321 = vst.msk [vmem:[%s226 + $0xbc] sm:$0xf] %vm2273, %v2064
      %2322 = vst.msk [vmem:[%s226 + $0xc0] sm:$0xf] %vm2273, %v2065
      %2323 = vst.msk [vmem:[%s226 + $0xc4] sm:$0xf] %vm2273, %v2066
      %2324 = vst.msk [vmem:[%s226 + $0xc8] sm:$0xf] %vm2273, %v2067
      %2325 = vst.msk [vmem:[%s226 + $0xcc] sm:$0xf] %vm2273, %v2068
      %2326 = vst.msk [vmem:[%s226 + $0xd0] sm:$0xf] %vm2273, %v2069
      %2327 = vst.msk [vmem:[%s226 + $0xd4] sm:$0xf] %vm2273, %v2070
      %2328 = vst.msk [vmem:[%s226 + $0xd8] sm:$0xf] %vm2273, %v2071
      %2329 = vst.msk [vmem:[%s226 + $0xdc] sm:$0xf] %vm2273, %v2072
      %2330 = vst.msk [vmem:[%s226 + $0xe0] sm:$0xf] %vm2273, %v2073
      %2331 = vst.msk [vmem:[%s226 + $0xe4] sm:$0xf] %vm2273, %v2074
      %2332 = vst.msk [vmem:[%s226 + $0xe8] sm:$0xf] %vm2273, %v2075
      %2333 = vst.msk [vmem:[%s226 + $0xec] sm:$0xf] %vm2273, %v2076
      %2334 = vst.msk [vmem:[%s226 + $0xf0] sm:$0xf] %vm2273, %v2077
      %2335 = vst.msk [vmem:[%s226 + $0xf4] sm:$0xf] %vm2273, %v2078
      %2336 = vst.msk [vmem:[%s226 + $0xf8] sm:$0xf] %vm2273, %v2079
      %2337 = vst.msk [vmem:[%s226 + $0xfc] sm:$0xf] %vm2273, %v2080
      %2338 = vst.msk [vmem:[%s226 + $0x100] sm:$0xf] %vm2273, %v2081
      %2339 = vst.msk [vmem:[%s226 + $0x104] sm:$0xf] %vm2273, %v2082
      %2340 = vst.msk [vmem:[%s226 + $0x108] sm:$0xf] %vm2273, %v2083
      %2341 = vst.msk [vmem:[%s226 + $0x10c] sm:$0xf] %vm2273, %v2084
      %2342 = vst.msk [vmem:[%s226 + $0x110] sm:$0xf] %vm2273, %v2085
      %2343 = vst.msk [vmem:[%s226 + $0x114] sm:$0xf] %vm2273, %v2086
      %2344 = vst.msk [vmem:[%s226 + $0x118] sm:$0xf] %vm2273, %v2087
      %2345 = vst.msk [vmem:[%s226 + $0x11c] sm:$0xf] %vm2273, %v2088
      %2346 = vst.msk [vmem:[%s226 + $0x120] sm:$0xf] %vm2273, %v2089
      %2347 = vst.msk [vmem:[%s226 + $0x124] sm:$0xf] %vm2273, %v2090
      %2348 = vst.msk [vmem:[%s226 + $0x128] sm:$0xf] %vm2273, %v2091
      %2349 = vst.msk [vmem:[%s226 + $0x12c] sm:$0xf] %vm2273, %v2092
      %2350 = vst.msk [vmem:[%s226 + $0x130] sm:$0xf] %vm2273, %v2093
      %2351 = vst.msk [vmem:[%s226 + $0x134] sm:$0xf] %vm2273, %v2094
      %2352 = vst.msk [vmem:[%s226 + $0x138] sm:$0xf] %vm2273, %v2095
      %2353 = vst.msk [vmem:[%s226 + $0x13c] sm:$0xf] %vm2273, %v2096
      %2354 = vst.msk [vmem:[%s226 + $0x140] sm:$0xf] %vm2273, %v2097
      %2355 = vst.msk [vmem:[%s226 + $0x144] sm:$0xf] %vm2273, %v2098
      %2356 = vst.msk [vmem:[%s226 + $0x148] sm:$0xf] %vm2273, %v2099
      %2357 = vst.msk [vmem:[%s226 + $0x14c] sm:$0xf] %vm2273, %v2100
      %2358 = vst.msk [vmem:[%s226 + $0x150] sm:$0xf] %vm2273, %v2101
      %2359 = vst.msk [vmem:[%s226 + $0x154] sm:$0xf] %vm2273, %v2102
      %2360 = vst.msk [vmem:[%s226 + $0x158] sm:$0xf] %vm2273, %v2103
      %2361 = vst.msk [vmem:[%s226 + $0x15c] sm:$0xf] %vm2273, %v2104
      %2362 = vst.msk [vmem:[%s226 + $0x160] sm:$0xf] %vm2273, %v2105
      %2363 = vst.msk [vmem:[%s226 + $0x164] sm:$0xf] %vm2273, %v2106
      %2364 = vst.msk [vmem:[%s226 + $0x168] sm:$0xf] %vm2273, %v2107
      %2365 = vst.msk [vmem:[%s226 + $0x16c] sm:$0xf] %vm2273, %v2108
      %2366 = vst.msk [vmem:[%s226 + $0x170] sm:$0xf] %vm2273, %v2109
      %2367 = vst.msk [vmem:[%s226 + $0x174] sm:$0xf] %vm2273, %v2110
      %2368 = vst.msk [vmem:[%s226 + $0x178] sm:$0xf] %vm2273, %v2111
      %2369 = vst.msk [vmem:[%s226 + $0x17c] sm:$0xf] %vm2273, %v2112
      %2370 = vst.msk [vmem:[%s226 + $0x180] sm:$0xf] %vm2273, %v2113
      %2371 = vst.msk [vmem:[%s226 + $0x184] sm:$0xf] %vm2273, %v2114
      %2372 = vst.msk [vmem:[%s226 + $0x188] sm:$0xf] %vm2273, %v2115
      %2373 = vst.msk [vmem:[%s226 + $0x18c] sm:$0xf] %vm2273, %v2116
      %2374 = vst.msk [vmem:[%s226 + $0x190] sm:$0xf] %vm2273, %v2117
      %2375 = vst.msk [vmem:[%s226 + $0x194] sm:$0xf] %vm2273, %v2118
      %2376 = vst.msk [vmem:[%s226 + $0x198] sm:$0xf] %vm2273, %v2119
      %2377 = vst.msk [vmem:[%s226 + $0x19c] sm:$0xf] %vm2273, %v2120
      %2378 = vst.msk [vmem:[%s226 + $0x1a0] sm:$0xf] %vm2273, %v2121
      %2379 = vst.msk [vmem:[%s226 + $0x1a4] sm:$0xf] %vm2273, %v2122
      %2380 = vst.msk [vmem:[%s226 + $0x1a8] sm:$0xf] %vm2273, %v2123
      %2381 = vst.msk [vmem:[%s226 + $0x1ac] sm:$0xf] %vm2273, %v2124
      %2382 = vst.msk [vmem:[%s226 + $0x1b0] sm:$0xf] %vm2273, %v2125
      %2383 = vst.msk [vmem:[%s226 + $0x1b4] sm:$0xf] %vm2273, %v2126
      %2384 = vst.msk [vmem:[%s226 + $0x1b8] sm:$0xf] %vm2273, %v2127
      %2385 = vst.msk [vmem:[%s226 + $0x1bc] sm:$0xf] %vm2273, %v2128
      %2386 = vst.msk [vmem:[%s226 + $0x1c0] sm:$0xf] %vm2273, %v2129
      %2387 = vst.msk [vmem:[%s226 + $0x1c4] sm:$0xf] %vm2273, %v2130
      %2388 = vst.msk [vmem:[%s226 + $0x1c8] sm:$0xf] %vm2273, %v2131
      %2389 = vst.msk [vmem:[%s226 + $0x1cc] sm:$0xf] %vm2273, %v2132
      %2390 = vst.msk [vmem:[%s226 + $0x1d0] sm:$0xf] %vm2273, %v2133
      %2391 = vst.msk [vmem:[%s226 + $0x1d4] sm:$0xf] %vm2273, %v2134
      %2392 = vst.msk [vmem:[%s226 + $0x1d8] sm:$0xf] %vm2273, %v2135
      %2393 = vst.msk [vmem:[%s226 + $0x1dc] sm:$0xf] %vm2273, %v2136
      %2394 = vst.msk [vmem:[%s226 + $0x1e0] sm:$0xf] %vm2273, %v2137
      %2395 = vst.msk [vmem:[%s226 + $0x1e4] sm:$0xf] %vm2273, %v2138
      %2396 = vst.msk [vmem:[%s226 + $0x1e8] sm:$0xf] %vm2273, %v2139
      %2397 = vst.msk [vmem:[%s226 + $0x1ec] sm:$0xf] %vm2273, %v2140
      %2398 = vst.msk [vmem:[%s226 + $0x1f0] sm:$0xf] %vm2273, %v2141
      %2399 = vst.msk [vmem:[%s226 + $0x1f4] sm:$0xf] %vm2273, %v2142
      %2400 = vst.msk [vmem:[%s226 + $0x1f8] sm:$0xf] %vm2273, %v2143
      %2401 = vst.msk [vmem:[%s226 + $0x1fc] sm:$0xf] %vm2273, %v2144
      %s2402 = smul.u32 128, %s18
      %p2403 = scmp.lt.s32.totalorder %s2402, 255
      %s2404 = scalar_select %p2403, %s2402, 255
      %p2405 = scmp.lt.s32.totalorder %s19, 0
      %s2406 = scalar_select %p2405, %s19, 0
      %s2407 = sadd.s32 %s2406, %s2404
      %s2408 = smul.addr %s2407, 4
      %s2409 = scalar_lea.vmem %s3, %s2408
      // Predicated region
      $region33: #{tpu_custom_call.1} parent=31 // pred_check
        %p2410 = pneg %p124
      $region34: #{tpu_custom_call.1} parent=31 // pred_check_branch
        %2412 = sbr.rel (%p2410) target = $region36
      $region35: #{tpu_custom_call.1} parent=31 // pred_region
        %s2413 = smul.u32 128, %s18
      $region36: #{tpu_custom_call.1} parent=31 // pred_fallthru
        _
    $region32: #{tpu_custom_call.1} parent=5 // pred_fallthru
      _
    %p2414 = scmp.le.s32.totalorder 2, %s9
    // Predicated region
    $region37: #{tpu_custom_call.1} parent=5 // pred_check
      %p2415 = pneg %p2414
    $region38: #{tpu_custom_call.1} parent=5 // pred_check_branch
      %2417 = sbr.rel (%p2415) target = $region40
    $region39: #{tpu_custom_call.1} parent=5 // pred_region
      %s2418 = ssub.s32 %s9, 2
      // Predicated region
      $region41: #{tpu_custom_call.1} parent=39 // pred_check
        %p2419 = pneg %p130
      $region42: #{tpu_custom_call.1} parent=39 // pred_check_branch
        %2421 = sbr.rel (%p2419) target = $region44
      $region43: #{tpu_custom_call.1} parent=39 // pred_region
        %s2422 = smul.u32 128, %s20
        %p2423 = scmp.lt.s32.totalorder %s2422, 255
        %s2424 = scalar_select %p2423, %s2422, 255
        %p2425 = scmp.lt.s32.totalorder %s21, 0
        %s2426 = scalar_select %p2425, %s21, 0
        %s2427 = sadd.s32 %s2426, %s2424
        %s2428 = smul.addr %s2427, 4
        %s2429 = scalar_lea.vmem %s3, %s2428
      $region44: #{tpu_custom_call.1} parent=39 // pred_fallthru
        _
    $region40: #{tpu_custom_call.1} parent=5 // pred_fallthru
      _
  $region6: #{tpu_custom_call.1} parent=0 // loop_footer
    %s13 = sadd.s32 1, %s9
  $region7: #{tpu_custom_call.1} parent=0 // loop_footer_branch
    %8 = sbr.rel target = $region3
  $region8: #{tpu_custom_call.1} parent=0 // loop_exit
    _

</llo_original>
